<compile_context>
chip_gen: v6e
topology: v6e:2x2x1
jax: 0.10.0
libtpu: 0.0.40
codegen_flags: <defaults>
</compile_context>

<pallas_src>
import jax
import jax.numpy as jnp
from jax import lax
from jax.experimental import pallas as pl
from jax.experimental.pallas import tpu as pltpu

_PAD = 128   # zero-extension of the lane axis so shifted views are static slices
_SUB = 8     # f32 sublane tile


def _round_up(x, m):
    return -(-x // m) * m


def _div_const(x, d):
    """x // d for non-negative int32 x, Python-int d (shift for powers of 2)."""
    if d == 1:
        return x
    if d & (d - 1) == 0:
        return x >> (d.bit_length() - 1)
    return x // d


def _mod_const(x, d):
    if d & (d - 1) == 0:
        return x & (d - 1)
    return x % d


def _make_geometry(c_in, channels, spatial, cfg):
    """Static per-layer geometry in flat 'original SxS lattice' coordinates."""
    k, cstr = cfg["c_kernel"], cfg["c_stride"]
    pk, pstr = cfg["p_kernel"], cfg["p_stride"]
    use_pool = cfg["use_pool"]
    geoms = []
    h = w = spatial
    rs, cs = spatial, 1            # flat row/col strides of the current lattice
    cprev = c_in
    for cout in channels:
        g = dict(c_in=cprev, c_out=cout, h_in=h, w_in=w, rs_in=rs, cs_in=cs)
        h_c = (h - k) // cstr + 1
        w_c = (w - k) // cstr + 1
        rs_c, cs_c = rs * cstr, cs * cstr
        g.update(h_conv=h_c, w_conv=w_c, rs_conv=rs_c, cs_conv=cs_c)
        if use_pool:
            h_p = (h_c - pk) // pstr + 1
            w_p = (w_c - pk) // pstr + 1
            g.update(h_out=h_p, w_out=w_p, rs_out=rs_c * pstr, cs_out=cs_c * pstr)
        else:
            g.update(h_out=h_c, w_out=w_c, rs_out=rs_c, cs_out=cs_c)
        h, w, rs, cs = g["h_out"], g["w_out"], g["rs_out"], g["cs_out"]
        cprev = cout
        geoms.append(g)
    return geoms


# --------------------------------------------------------------------------
# Fused forward kernel (conv+BN+ReLU+pool per layer, then flatten+dense+ReLU)
# --------------------------------------------------------------------------
def _build_forward_kernel(geoms, HW, N, latent_dim, cfg):
    k = cfg["c_kernel"]
    pk, pstr = cfg["p_kernel"], cfg["p_stride"]
    use_pool = cfg["use_pool"]
    n_layers = len(geoms)
    L = N * HW
    g_last = geoms[-1]

    max_shift = max((k - 1) * (g["rs_in"] + g["cs_in"]) for g in geoms)
    if use_pool:
        max_shift = max(max_shift,
                        max((pk - 1) * (g["rs_conv"] + g["cs_conv"]) for g in geoms))
    assert max_shift <= _PAD, "increase _PAD for this configuration"

    n_in = 3 + 2 * n_layers
    n_out = 1 + (n_layers if use_pool else 0)

    def kernel(*refs):
        in_refs = refs[:n_in]
        out_refs = refs[n_in:n_in + n_out]
        act_scr, conv_scr, feat_scr = refs[n_in + n_out:]

        x_ref = in_refs[0]
        w_refs = [in_refs[1 + 2 * i] for i in range(n_layers)]
        b_refs = [in_refs[2 + 2 * i] for i in range(n_layers)]
        wd_ref, bd_ref = in_refs[n_in - 2], in_refs[n_in - 1]
        latent_ref = out_refs[0]
        idx_refs = list(out_refs[1:])

        # Persistent VMEM scratch replaces the old per-layer concatenate copies.
        # Zero once: the pad lanes [L:L+_PAD] stay zero for all shifted reads,
        # and rows beyond a layer's c_out only ever multiply zero weight columns.
        act_scr[...] = jnp.zeros_like(act_scr)
        conv_scr[...] = jnp.zeros_like(conv_scr)

        for li, g in enumerate(geoms):
            c_in, c_out = g["c_in"], g["c_out"]
            cpad = _round_up(c_in, _SUB)
            rs_in, cs_in = g["rs_in"], g["cs_in"]
            src = x_ref if li == 0 else act_scr

            # ---- Conv2d (+ folded BN scale): ONE MXU matmul per layer.
            # The k*k lane-shifted (cpad, L) views are stacked along the
            # sublane/contraction axis (8-aligned pieces -> aligned concat), so
            # the per-tap dot + dependent f32 accumulate chain disappears. ----
            views = []
            for dy in range(k):
                for dx in range(k):
                    sh = dy * rs_in + dx * cs_in
                    views.append(src[0:cpad, sh:sh + L])          # (cpad, L) f32
            stacked = jnp.concatenate(views, axis=0).astype(jnp.bfloat16)
            acc = jnp.dot(w_refs[li][...], stacked,
                          preferred_element_type=jnp.float32)     # (c_out, L) f32
            # BatchNorm shift (+ conv bias) and ReLU epilogue, f32.
            conv = jnp.maximum(acc + b_refs[li][...], 0.0)

            if use_pool:
                # ---- MaxPool2d(return_indices=True): argmax over pk*pk shifted
                # candidate planes read from the f32 conv scratch; index math is
                # hoisted out of the candidate loop (lane-only iota base, the
                # argmax only tracks the small window offset). ----
                rs_c, cs_c = g["rs_conv"], g["cs_conv"]
                rs_p, cs_p = g["rs_out"], g["cs_out"]
                w_c = g["w_conv"]
                conv_scr[0:c_out, 0:L] = conv
                flat = lax.broadcasted_iota(jnp.int32, (1, L), 1)
                p_i = _div_const(_mod_const(flat, HW), rs_p)
                q_i = _div_const(_mod_const(flat, rs_p), cs_p)
                base = (p_i * pstr) * w_c + q_i * pstr            # (1, L) int32
                best_v = None
                best_off = None
                for dy in range(pk):
                    for dx in range(pk):
                        sh = dy * rs_c + dx * cs_c
                        vc = conv_scr[0:c_out, sh:sh + L]         # (c_out, L) f32
                        off = dy * w_c + dx                       # python int
                        if best_v is None:
                            best_v = vc
                            best_off = jnp.zeros((c_out, L), jnp.int32)
                        else:
                            take = vc > best_v     # first candidate wins ties (== torch)
                            best_v = jnp.where(take, vc, best_v)
                            best_off = jnp.where(take, jnp.int32(off), best_off)
                idx_refs[li][...] = base + best_off               # PyTorch flat indices
                act_scr[0:c_out, 0:L] = best_v
            else:
                act_scr[0:c_out, 0:L] = conv

        # ---- flatten + Linear + ReLU: gather the h_o*w_o*N valid lattice
        # columns into ONE (feat, N) tile, then ONE matmul and ONE store
        # (replaces N*h_o*w_o chained 1-lane dots / 1-lane masked stores). ----
        c_last, h_o, w_o = g_last["c_out"], g_last["h_out"], g_last["w_out"]
        rs_o, cs_o = g_last["rs_out"], g_last["cs_out"]
        for sp in range(h_o * w_o):
            p, q = divmod(sp, w_o)
            for n in range(N):
                col = n * HW + p * rs_o + q * cs_o
                feat_scr[sp * c_last:(sp + 1) * c_last, n:n + 1] = \
                    act_scr[0:c_last, col:col + 1]
        feat = feat_scr[...].astype(jnp.bfloat16)                 # (feat, N)
        res = jnp.dot(wd_ref[...], feat, preferred_element_type=jnp.float32)
        latent_ref[...] = jnp.maximum(res + bd_ref[...], 0.0)     # (latent, N)

    return kernel


# --------------------------------------------------------------------------
# Parameters (deterministic synthetic, pre-folded / reordered for the kernel)
# --------------------------------------------------------------------------
def make_params(key, in_channels, channels, latent_dim, spatial, cfg):
    k = cfg["c_kernel"]
    geoms = _make_geometry(in_channels, channels, spatial, cfg)
    params = {"layers": [], "geoms": geoms, "latent_dim": latent_dim,
              "spatial": spatial}
    for g in geoms:
        c_in, c_out = g["c_in"], g["c_out"]
        cpad = _round_up(c_in, _SUB)
        key, k1, k2, k3, k4, k5, k6 = jax.random.split(key, 7)
        w_conv = 0.1 * jax.random.normal(k1, (c_out, c_in, k, k), jnp.float32)
        b_conv = 0.1 * jax.random.normal(k2, (c_out,), jnp.float32)
        gamma = 1.0 + 0.1 * jax.random.normal(k3, (c_out,), jnp.float32)
        beta = 0.1 * jax.random.normal(k4, (c_out,), jnp.float32)
        run_mean = 0.1 * jax.random.normal(k5, (c_out,), jnp.float32)
        run_var = 1.0 + 0.05 * jax.random.uniform(k6, (c_out,), jnp.float32)
        s_bn = gamma / jnp.sqrt(run_var + 1e-5)
        shift = (b_conv - run_mean) * s_bn + beta
        # Fold BN scale into conv weights.  Input channels are zero-padded to
        # the 8-sublane tile so the in-kernel stacked im2col tile is aligned;
        # columns ordered (dy, dx, ci_pad) to match the stacked row order.
        w_folded = w_conv * s_bn[:, None, None, None]
        w_padc = jnp.pad(w_folded, ((0, 0), (0, cpad - c_in), (0, 0), (0, 0)))
        w_mat = jnp.transpose(w_padc, (0, 2, 3, 1)).reshape(c_out, k * k * cpad)
        params["layers"].append({
            "w_mat": w_mat.astype(jnp.bfloat16),           # bf16 MXU operand
            "shift": shift.reshape(c_out, 1),              # f32 epilogue
        })
    c_last, h_o, w_o = geoms[-1]["c_out"], geoms[-1]["h_out"], geoms[-1]["w_out"]
    feat = c_last * h_o * w_o
    key, k1, k2 = jax.random.split(key, 3)
    wd = 0.1 * jax.random.normal(k1, (latent_dim, feat), jnp.float32)  # torch Linear layout
    bd = 0.1 * jax.random.normal(k2, (latent_dim,), jnp.float32)
    # Reorder dense columns from torch flatten order (c, p, q) to (p*w+q, c).
    wd_r = jnp.transpose(wd.reshape(latent_dim, c_last, h_o * w_o), (0, 2, 1))
    params["dense_w"] = wd_r.reshape(latent_dim, feat).astype(jnp.bfloat16)
    params["dense_b"] = bd.reshape(latent_dim, 1)
    return params


# --------------------------------------------------------------------------
# Forward (mirrors DynamicEncoder.forward)
# --------------------------------------------------------------------------
def dynamic_encoder_forward(x, params, cfg):
    """Returns (latent, pool_indices, decoding_shapes)."""
    N, c_in, S, _ = x.shape
    geoms = params["geoms"]
    latent_dim = params["latent_dim"]
    HW = S * S
    L = N * HW
    cpad0 = _round_up(c_in, _SUB)

    # Input layout prep (tiny): NCHW -> channel-major (C, N*H*W), rows padded
    # to the sublane tile, lanes zero-extended so in-kernel shifted views are
    # plain static slices.
    x2 = jnp.transpose(x, (1, 0, 2, 3)).reshape(c_in, L)
    x2 = jnp.pad(x2, ((0, cpad0 - c_in), (0, _PAD))).astype(jnp.float32)

    inputs = [x2]
    for layer in params["layers"]:
        inputs += [layer["w_mat"], layer["shift"]]
    inputs += [params["dense_w"], params["dense_b"]]

    out_shape = [jax.ShapeDtypeStruct((latent_dim, N), jnp.float32)]
    if cfg["use_pool"]:
        out_shape += [jax.ShapeDtypeStruct((g["c_out"], L), jnp.int32) for g in geoms]

    g_last = geoms[-1]
    feat = g_last["c_out"] * g_last["h_out"] * g_last["w_out"]
    c_scr = max(_round_up(g["c_out"], _SUB) for g in geoms)
    scratch_shapes = [
        pltpu.VMEM((c_scr, L + _PAD), jnp.float32),   # inter-layer activation
        pltpu.VMEM((c_scr, L + _PAD), jnp.float32),   # conv result for pool shifts
        pltpu.VMEM((feat, N), jnp.float32),           # gathered dense features
    ]

    kernel = _build_forward_kernel(geoms, HW, N, latent_dim, cfg)
    # grid=(1,): the whole working set (<1 MiB) lives in VMEM for one launch.
    outs = pl.pallas_call(
        kernel,
        out_shape=tuple(out_shape),
        grid=(1,),
        in_specs=[pl.BlockSpec(a.shape, lambda i: (0, 0)) for a in inputs],
        out_specs=tuple(pl.BlockSpec(o.shape, lambda i: (0, 0)) for o in out_shape),
        scratch_shapes=scratch_shapes,
        compiler_params=pltpu.CompilerParams(dimension_semantics=("arbitrary",)),
    )(*inputs)

    # (latent, N) -> (N, latent): tiny 32x2 XLA transpose kept outside the
    # kernel on purpose (lowering-safe; negligible cost at this size).
    latent = jnp.transpose(outs[0])

    # Output formatting only: gather the valid lattice points of each in-kernel
    # (C, L) index plane into PyTorch's (N, C, H_out, W_out) layout.
    pool_indices = []
    if cfg["use_pool"]:
        for g, plane in zip(geoms, outs[1:]):
            assert g["rs_out"] % S == 0 and g["cs_out"] < S
            rstep, cstep = g["rs_out"] // S, g["cs_out"]
            h_p, w_p = g["h_out"], g["w_out"]
            idx = plane.reshape(g["c_out"], N, S, S)
            idx = idx[:, :, :(h_p - 1) * rstep + 1:rstep,
                      :(w_p - 1) * cstep + 1:cstep]
            pool_indices.append(jnp.transpose(idx, (1, 0, 2, 3)))

    # decoding_shapes mirrors the PyTorch forward (static bookkeeping).
    decoding_shapes = []
    c, h, w = c_in, S, S
    for g in geoms:
        decoding_shapes.append(("conv", (N, c, h, w)))
        c, h, w = g["c_out"], g["h_conv"], g["w_conv"]
        if cfg["use_pool"]:
            decoding_shapes.append(("pool", (N, c, h, w)))
            h, w = g["h_out"], g["w_out"]
    decoding_shapes.append(("flatten", (N, c, h, w)))
    decoding_shapes.append(("dense", (N, c * h * w)))
    # dropout2d / dropout(latent): Identity (use_dropout*=False in the config)
    return latent, pool_indices, decoding_shapes


# --------------------------------------------------------------------------
if __name__ == "__main__":
    cfg = {
        "c_kernel": 3,
        "c_stride": 1,
        "p_kernel": 2,
        "p_stride": 2,
        "use_pool": True,
        "use_dropout": False,
        "use_dropout_latent": False,
        "latent_dimension": 32,
    }
    channels = [8, 16]      # dim_out per encoder layer
    N, C_in, S = 2, 4, 16   # batch, input channels, spatial

    key = jax.random.PRNGKey(0)
    key, xkey = jax.random.split(key)
    x = jax.random.normal(xkey, (N, C_in, S, S), jnp.float32)

    params = make_params(key, C_in, channels, cfg["latent_dimension"], S, cfg)

    out, pool_indices, decoding_shapes = dynamic_encoder_forward(x, params, cfg)
    out = jax.block_until_ready(out)
    pool_indices = [jax.block_until_ready(p) for p in pool_indices]

    assert out.shape == (N, cfg["latent_dimension"])
    assert len(pool_indices) == len(channels)
    assert pool_indices[0].shape == (N, channels[0], 7, 7)
    assert pool_indices[1].shape == (N, channels[1], 2, 2)
    assert decoding_shapes[-1][0] == "dense"
    print("KERNEL_OK")
</pallas_src>

<mosaic_0001>
module attributes {stable_mosaic.version = 11 : i64} {
  func.func @kernel(%arg0: i32, %arg1: memref<8x640xf32, #tpu.memory_space<vmem>>, %arg2: memref<8x72xbf16, #tpu.memory_space<vmem>>, %arg3: memref<8x1xf32, #tpu.memory_space<vmem>>, %arg4: memref<16x72xbf16, #tpu.memory_space<vmem>>, %arg5: memref<16x1xf32, #tpu.memory_space<vmem>>, %arg6: memref<32x64xbf16, #tpu.memory_space<vmem>>, %arg7: memref<32x1xf32, #tpu.memory_space<vmem>>, %arg8: memref<32x2xf32, #tpu.memory_space<vmem>>, %arg9: memref<8x512xi32, #tpu.memory_space<vmem>>, %arg10: memref<16x512xi32, #tpu.memory_space<vmem>>, %arg11: memref<16x640xf32, #tpu.memory_space<vmem>>, %arg12: memref<16x640xf32, #tpu.memory_space<vmem>>, %arg13: memref<64x2xf32, #tpu.memory_space<vmem>>) attributes {dimension_semantics = [#tpu.dimension_semantics<arbitrary>], iteration_bounds = array<i64: 1>, scalar_prefetch = 0 : i64, scratch_operands = 3 : i64, tpu.core_type = #tpu.core_type<tc>, window_params = [{pipeline_mode = #tpu.pipeline_mode<synchronous>, transform_indices = @transform_0, window_bounds = array<i64: 8, 640>}, {pipeline_mode = #tpu.pipeline_mode<synchronous>, transform_indices = @transform_1, window_bounds = array<i64: 8, 72>}, {pipeline_mode = #tpu.pipeline_mode<synchronous>, transform_indices = @transform_2, window_bounds = array<i64: 8, 1>}, {pipeline_mode = #tpu.pipeline_mode<synchronous>, transform_indices = @transform_3, window_bounds = array<i64: 16, 72>}, {pipeline_mode = #tpu.pipeline_mode<synchronous>, transform_indices = @transform_4, window_bounds = array<i64: 16, 1>}, {pipeline_mode = #tpu.pipeline_mode<synchronous>, transform_indices = @transform_5, window_bounds = array<i64: 32, 64>}, {pipeline_mode = #tpu.pipeline_mode<synchronous>, transform_indices = @transform_6, window_bounds = array<i64: 32, 1>}, {pipeline_mode = #tpu.pipeline_mode<synchronous>, transform_indices = @transform_7, window_bounds = array<i64: 32, 2>}, {pipeline_mode = #tpu.pipeline_mode<synchronous>, transform_indices = @transform_8, window_bounds = array<i64: 8, 512>}, {pipeline_mode = #tpu.pipeline_mode<synchronous>, transform_indices = @transform_9, window_bounds = array<i64: 16, 512>}]} {
    %cst = arith.constant 0.000000e+00 : f32
    %0 = vector.broadcast %cst : f32 to vector<16x640xf32>
    %c0 = arith.constant 0 : index
    %c0_0 = arith.constant 0 : index
    %1 = vector.load %arg11[%c0, %c0_0] : memref<16x640xf32, #tpu.memory_space<vmem>>, vector<16x640xf32>
    tpu.vector_store %arg11[%c0, %c0_0], %0 {strides = array<i32>} : memref<16x640xf32, #tpu.memory_space<vmem>>, vector<16x640xf32>,
    %cst_1 = arith.constant 0.000000e+00 : f32
    %2 = vector.broadcast %cst_1 : f32 to vector<16x640xf32>
    %c0_2 = arith.constant 0 : index
    %c0_3 = arith.constant 0 : index
    %3 = vector.load %arg12[%c0_2, %c0_3] : memref<16x640xf32, #tpu.memory_space<vmem>>, vector<16x640xf32>
    tpu.vector_store %arg12[%c0_2, %c0_3], %2 {strides = array<i32>} : memref<16x640xf32, #tpu.memory_space<vmem>>, vector<16x640xf32>,
    %c0_4 = arith.constant 0 : index
    %c0_5 = arith.constant 0 : index
    %4 = vector.load %arg1[%c0_4, %c0_5] : memref<8x640xf32, #tpu.memory_space<vmem>>, vector<8x512xf32>
    %c0_6 = arith.constant 0 : index
    %c1 = arith.constant 1 : index
    %5 = vector.load %arg1[%c0_6, %c1] : memref<8x640xf32, #tpu.memory_space<vmem>>, vector<8x512xf32>
    %c0_7 = arith.constant 0 : index
    %c2 = arith.constant 2 : index
    %6 = vector.load %arg1[%c0_7, %c2] : memref<8x640xf32, #tpu.memory_space<vmem>>, vector<8x512xf32>
    %c0_8 = arith.constant 0 : index
    %c16 = arith.constant 16 : index
    %7 = vector.load %arg1[%c0_8, %c16] : memref<8x640xf32, #tpu.memory_space<vmem>>, vector<8x512xf32>
    %c0_9 = arith.constant 0 : index
    %c17 = arith.constant 17 : index
    %8 = vector.load %arg1[%c0_9, %c17] : memref<8x640xf32, #tpu.memory_space<vmem>>, vector<8x512xf32>
    %c0_10 = arith.constant 0 : index
    %c18 = arith.constant 18 : index
    %9 = vector.load %arg1[%c0_10, %c18] : memref<8x640xf32, #tpu.memory_space<vmem>>, vector<8x512xf32>
    %c0_11 = arith.constant 0 : index
    %c32 = arith.constant 32 : index
    %10 = vector.load %arg1[%c0_11, %c32] : memref<8x640xf32, #tpu.memory_space<vmem>>, vector<8x512xf32>
    %c0_12 = arith.constant 0 : index
    %c33 = arith.constant 33 : index
    %11 = vector.load %arg1[%c0_12, %c33] : memref<8x640xf32, #tpu.memory_space<vmem>>, vector<8x512xf32>
    %c0_13 = arith.constant 0 : index
    %c34 = arith.constant 34 : index
    %12 = vector.load %arg1[%c0_13, %c34] : memref<8x640xf32, #tpu.memory_space<vmem>>, vector<8x512xf32>
    %13 = tpu.concatenate %4, %5, %6, %7, %8, %9, %10, %11, %12 in 0 : vector<8x512xf32>, vector<8x512xf32>, vector<8x512xf32>, vector<8x512xf32>, vector<8x512xf32>, vector<8x512xf32>, vector<8x512xf32>, vector<8x512xf32>, vector<8x512xf32> -> vector<72x512xf32>
    %14 = arith.truncf %13 : vector<72x512xf32> to vector<72x512xbf16>
    %c0_14 = arith.constant 0 : index
    %c0_15 = arith.constant 0 : index
    %15 = vector.load %arg2[%c0_14, %c0_15] : memref<8x72xbf16, #tpu.memory_space<vmem>>, vector<8x72xbf16>
    %cst_16 = arith.constant dense<0.000000e+00> : vector<8x512xf32>
    %16 = tpu.matmul %15, %14, %cst_16 {dimension_numbers = #tpu.dot_dimension_numbers<[1], [0], [0], [1], [0, 0, 1, 1], [], []>} : vector<8x72xbf16>, vector<72x512xbf16>, vector<8x512xf32> -> vector<8x512xf32>
    %c0_17 = arith.constant 0 : index
    %c0_18 = arith.constant 0 : index
    %17 = vector.load %arg3[%c0_17, %c0_18] : memref<8x1xf32, #tpu.memory_space<vmem>>, vector<8x1xf32>
    %18 = vector.broadcast %17 : vector<8x1xf32> to vector<8x512xf32>
    %19 = arith.addf %16, %18 : vector<8x512xf32>
    %cst_19 = arith.constant 0.000000e+00 : f32
    %20 = vector.broadcast %cst_19 : f32 to vector<8x512xf32>
    %21 = arith.maximumf %19, %20 : vector<8x512xf32>
    %c0_20 = arith.constant 0 : index
    %c0_21 = arith.constant 0 : index
    %22 = vector.load %arg12[%c0_20, %c0_21] : memref<16x640xf32, #tpu.memory_space<vmem>>, vector<8x512xf32>
    tpu.vector_store %arg12[%c0_20, %c0_21], %21 {strides = array<i32>} : memref<16x640xf32, #tpu.memory_space<vmem>>, vector<8x512xf32>,
    %23 = tpu.iota {dimensions = array<i32: 1>} : vector<1x512xi32>
    %c255_i32 = arith.constant 255 : i32
    %24 = vector.broadcast %c255_i32 : i32 to vector<1x512xi32>
    %25 = arith.andi %23, %24 : vector<1x512xi32>
    %c5_i32 = arith.constant 5 : i32
    %26 = vector.broadcast %c5_i32 : i32 to vector<1x512xi32>
    %27 = arith.shrsi %25, %26 : vector<1x512xi32>
    %c31_i32 = arith.constant 31 : i32
    %28 = vector.broadcast %c31_i32 : i32 to vector<1x512xi32>
    %29 = arith.andi %23, %28 : vector<1x512xi32>
    %c1_i32 = arith.constant 1 : i32
    %30 = vector.broadcast %c1_i32 : i32 to vector<1x512xi32>
    %31 = arith.shrsi %29, %30 : vector<1x512xi32>
    %c2_i32 = arith.constant 2 : i32
    %32 = vector.broadcast %c2_i32 : i32 to vector<1x512xi32>
    %33 = arith.muli %27, %32 : vector<1x512xi32>
    %c14_i32 = arith.constant 14 : i32
    %34 = vector.broadcast %c14_i32 : i32 to vector<1x512xi32>
    %35 = arith.muli %33, %34 : vector<1x512xi32>
    %c2_i32_22 = arith.constant 2 : i32
    %36 = vector.broadcast %c2_i32_22 : i32 to vector<1x512xi32>
    %37 = arith.muli %31, %36 : vector<1x512xi32>
    %38 = arith.addi %35, %37 : vector<1x512xi32>
    %c0_23 = arith.constant 0 : index
    %c0_24 = arith.constant 0 : index
    %39 = vector.load %arg12[%c0_23, %c0_24] : memref<16x640xf32, #tpu.memory_space<vmem>>, vector<8x512xf32>
    %c0_i32 = arith.constant 0 : i32
    %40 = vector.broadcast %c0_i32 : i32 to vector<8x512xi32>
    %c0_25 = arith.constant 0 : index
    %c1_26 = arith.constant 1 : index
    %41 = vector.load %arg12[%c0_25, %c1_26] : memref<16x640xf32, #tpu.memory_space<vmem>>, vector<8x512xf32>
    %42 = arith.cmpf ogt, %41, %39 : vector<8x512xf32>
    %43 = arith.select %42, %41, %39 : vector<8x512xi1>, vector<8x512xf32>
    %c1_i32_27 = arith.constant 1 : i32
    %44 = vector.broadcast %c1_i32_27 : i32 to vector<8x512xi32>
    %45 = arith.select %42, %44, %40 : vector<8x512xi1>, vector<8x512xi32>
    %c0_28 = arith.constant 0 : index
    %c16_29 = arith.constant 16 : index
    %46 = vector.load %arg12[%c0_28, %c16_29] : memref<16x640xf32, #tpu.memory_space<vmem>>, vector<8x512xf32>
    %47 = arith.cmpf ogt, %46, %43 : vector<8x512xf32>
    %48 = arith.select %47, %46, %43 : vector<8x512xi1>, vector<8x512xf32>
    %c14_i32_30 = arith.constant 14 : i32
    %49 = vector.broadcast %c14_i32_30 : i32 to vector<8x512xi32>
    %50 = arith.select %47, %49, %45 : vector<8x512xi1>, vector<8x512xi32>
    %c0_31 = arith.constant 0 : index
    %c17_32 = arith.constant 17 : index
    %51 = vector.load %arg12[%c0_31, %c17_32] : memref<16x640xf32, #tpu.memory_space<vmem>>, vector<8x512xf32>
    %52 = arith.cmpf ogt, %51, %48 : vector<8x512xf32>
    %53 = arith.select %52, %51, %48 : vector<8x512xi1>, vector<8x512xf32>
    %c15_i32 = arith.constant 15 : i32
    %54 = vector.broadcast %c15_i32 : i32 to vector<8x512xi32>
    %55 = arith.select %52, %54, %50 : vector<8x512xi1>, vector<8x512xi32>
    %56 = vector.broadcast %38 : vector<1x512xi32> to vector<8x512xi32>
    %57 = arith.addi %56, %55 : vector<8x512xi32>
    %c0_33 = arith.constant 0 : index
    %c0_34 = arith.constant 0 : index
    %58 = vector.load %arg9[%c0_33, %c0_34] : memref<8x512xi32, #tpu.memory_space<vmem>>, vector<8x512xi32>
    tpu.vector_store %arg9[%c0_33, %c0_34], %57 {strides = array<i32>} : memref<8x512xi32, #tpu.memory_space<vmem>>, vector<8x512xi32>,
    %c0_35 = arith.constant 0 : index
    %c0_36 = arith.constant 0 : index
    %59 = vector.load %arg11[%c0_35, %c0_36] : memref<16x640xf32, #tpu.memory_space<vmem>>, vector<8x512xf32>
    tpu.vector_store %arg11[%c0_35, %c0_36], %53 {strides = array<i32>} : memref<16x640xf32, #tpu.memory_space<vmem>>, vector<8x512xf32>,
    %c0_37 = arith.constant 0 : index
    %c0_38 = arith.constant 0 : index
    %60 = vector.load %arg11[%c0_37, %c0_38] : memref<16x640xf32, #tpu.memory_space<vmem>>, vector<8x512xf32>
    %c0_39 = arith.constant 0 : index
    %c2_40 = arith.constant 2 : index
    %61 = vector.load %arg11[%c0_39, %c2_40] : memref<16x640xf32, #tpu.memory_space<vmem>>, vector<8x512xf32>
    %c0_41 = arith.constant 0 : index
    %c4 = arith.constant 4 : index
    %62 = vector.load %arg11[%c0_41, %c4] : memref<16x640xf32, #tpu.memory_space<vmem>>, vector<8x512xf32>
    %c0_42 = arith.constant 0 : index
    %c32_43 = arith.constant 32 : index
    %63 = vector.load %arg11[%c0_42, %c32_43] : memref<16x640xf32, #tpu.memory_space<vmem>>, vector<8x512xf32>
    %c0_44 = arith.constant 0 : index
    %c34_45 = arith.constant 34 : index
    %64 = vector.load %arg11[%c0_44, %c34_45] : memref<16x640xf32, #tpu.memory_space<vmem>>, vector<8x512xf32>
    %c0_46 = arith.constant 0 : index
    %c36 = arith.constant 36 : index
    %65 = vector.load %arg11[%c0_46, %c36] : memref<16x640xf32, #tpu.memory_space<vmem>>, vector<8x512xf32>
    %c0_47 = arith.constant 0 : index
    %c64 = arith.constant 64 : index
    %66 = vector.load %arg11[%c0_47, %c64] : memref<16x640xf32, #tpu.memory_space<vmem>>, vector<8x512xf32>
    %c0_48 = arith.constant 0 : index
    %c66 = arith.constant 66 : index
    %67 = vector.load %arg11[%c0_48, %c66] : memref<16x640xf32, #tpu.memory_space<vmem>>, vector<8x512xf32>
    %c0_49 = arith.constant 0 : index
    %c68 = arith.constant 68 : index
    %68 = vector.load %arg11[%c0_49, %c68] : memref<16x640xf32, #tpu.memory_space<vmem>>, vector<8x512xf32>
    %69 = tpu.concatenate %60, %61, %62, %63, %64, %65, %66, %67, %68 in 0 : vector<8x512xf32>, vector<8x512xf32>, vector<8x512xf32>, vector<8x512xf32>, vector<8x512xf32>, vector<8x512xf32>, vector<8x512xf32>, vector<8x512xf32>, vector<8x512xf32> -> vector<72x512xf32>
    %70 = arith.truncf %69 : vector<72x512xf32> to vector<72x512xbf16>
    %c0_50 = arith.constant 0 : index
    %c0_51 = arith.constant 0 : index
    %71 = vector.load %arg4[%c0_50, %c0_51] : memref<16x72xbf16, #tpu.memory_space<vmem>>, vector<16x72xbf16>
    %cst_52 = arith.constant dense<0.000000e+00> : vector<16x512xf32>
    %72 = tpu.matmul %71, %70, %cst_52 {dimension_numbers = #tpu.dot_dimension_numbers<[1], [0], [0], [1], [0, 0, 1, 1], [], []>} : vector<16x72xbf16>, vector<72x512xbf16>, vector<16x512xf32> -> vector<16x512xf32>
    %c0_53 = arith.constant 0 : index
    %c0_54 = arith.constant 0 : index
    %73 = vector.load %arg5[%c0_53, %c0_54] : memref<16x1xf32, #tpu.memory_space<vmem>>, vector<16x1xf32>
    %74 = vector.broadcast %73 : vector<16x1xf32> to vector<16x512xf32>
    %75 = arith.addf %72, %74 : vector<16x512xf32>
    %cst_55 = arith.constant 0.000000e+00 : f32
    %76 = vector.broadcast %cst_55 : f32 to vector<16x512xf32>
    %77 = arith.maximumf %75, %76 : vector<16x512xf32>
    %c0_56 = arith.constant 0 : index
    %c0_57 = arith.constant 0 : index
    %78 = vector.load %arg12[%c0_56, %c0_57] : memref<16x640xf32, #tpu.memory_space<vmem>>, vector<16x512xf32>
    tpu.vector_store %arg12[%c0_56, %c0_57], %77 {strides = array<i32>} : memref<16x640xf32, #tpu.memory_space<vmem>>, vector<16x512xf32>,
    %79 = tpu.iota {dimensions = array<i32: 1>} : vector<1x512xi32>
    %c255_i32_58 = arith.constant 255 : i32
    %80 = vector.broadcast %c255_i32_58 : i32 to vector<1x512xi32>
    %81 = arith.andi %79, %80 : vector<1x512xi32>
    %c6_i32 = arith.constant 6 : i32
    %82 = vector.broadcast %c6_i32 : i32 to vector<1x512xi32>
    %83 = arith.shrsi %81, %82 : vector<1x512xi32>
    %c63_i32 = arith.constant 63 : i32
    %84 = vector.broadcast %c63_i32 : i32 to vector<1x512xi32>
    %85 = arith.andi %79, %84 : vector<1x512xi32>
    %c2_i32_59 = arith.constant 2 : i32
    %86 = vector.broadcast %c2_i32_59 : i32 to vector<1x512xi32>
    %87 = arith.shrsi %85, %86 : vector<1x512xi32>
    %c2_i32_60 = arith.constant 2 : i32
    %88 = vector.broadcast %c2_i32_60 : i32 to vector<1x512xi32>
    %89 = arith.muli %83, %88 : vector<1x512xi32>
    %c5_i32_61 = arith.constant 5 : i32
    %90 = vector.broadcast %c5_i32_61 : i32 to vector<1x512xi32>
    %91 = arith.muli %89, %90 : vector<1x512xi32>
    %c2_i32_62 = arith.constant 2 : i32
    %92 = vector.broadcast %c2_i32_62 : i32 to vector<1x512xi32>
    %93 = arith.muli %87, %92 : vector<1x512xi32>
    %94 = arith.addi %91, %93 : vector<1x512xi32>
    %c0_63 = arith.constant 0 : index
    %c0_64 = arith.constant 0 : index
    %95 = vector.load %arg12[%c0_63, %c0_64] : memref<16x640xf32, #tpu.memory_space<vmem>>, vector<16x512xf32>
    %c0_i32_65 = arith.constant 0 : i32
    %96 = vector.broadcast %c0_i32_65 : i32 to vector<16x512xi32>
    %c0_66 = arith.constant 0 : index
    %c2_67 = arith.constant 2 : index
    %97 = vector.load %arg12[%c0_66, %c2_67] : memref<16x640xf32, #tpu.memory_space<vmem>>, vector<16x512xf32>
    %98 = arith.cmpf ogt, %97, %95 : vector<16x512xf32>
    %99 = arith.select %98, %97, %95 : vector<16x512xi1>, vector<16x512xf32>
    %c1_i32_68 = arith.constant 1 : i32
    %100 = vector.broadcast %c1_i32_68 : i32 to vector<16x512xi32>
    %101 = arith.select %98, %100, %96 : vector<16x512xi1>, vector<16x512xi32>
    %c0_69 = arith.constant 0 : index
    %c32_70 = arith.constant 32 : index
    %102 = vector.load %arg12[%c0_69, %c32_70] : memref<16x640xf32, #tpu.memory_space<vmem>>, vector<16x512xf32>
    %103 = arith.cmpf ogt, %102, %99 : vector<16x512xf32>
    %104 = arith.select %103, %102, %99 : vector<16x512xi1>, vector<16x512xf32>
    %c5_i32_71 = arith.constant 5 : i32
    %105 = vector.broadcast %c5_i32_71 : i32 to vector<16x512xi32>
    %106 = arith.select %103, %105, %101 : vector<16x512xi1>, vector<16x512xi32>
    %c0_72 = arith.constant 0 : index
    %c34_73 = arith.constant 34 : index
    %107 = vector.load %arg12[%c0_72, %c34_73] : memref<16x640xf32, #tpu.memory_space<vmem>>, vector<16x512xf32>
    %108 = arith.cmpf ogt, %107, %104 : vector<16x512xf32>
    %109 = arith.select %108, %107, %104 : vector<16x512xi1>, vector<16x512xf32>
    %c6_i32_74 = arith.constant 6 : i32
    %110 = vector.broadcast %c6_i32_74 : i32 to vector<16x512xi32>
    %111 = arith.select %108, %110, %106 : vector<16x512xi1>, vector<16x512xi32>
    %112 = vector.broadcast %94 : vector<1x512xi32> to vector<16x512xi32>
    %113 = arith.addi %112, %111 : vector<16x512xi32>
    %c0_75 = arith.constant 0 : index
    %c0_76 = arith.constant 0 : index
    %114 = vector.load %arg10[%c0_75, %c0_76] : memref<16x512xi32, #tpu.memory_space<vmem>>, vector<16x512xi32>
    tpu.vector_store %arg10[%c0_75, %c0_76], %113 {strides = array<i32>} : memref<16x512xi32, #tpu.memory_space<vmem>>, vector<16x512xi32>,
    %c0_77 = arith.constant 0 : index
    %c0_78 = arith.constant 0 : index
    %115 = vector.load %arg11[%c0_77, %c0_78] : memref<16x640xf32, #tpu.memory_space<vmem>>, vector<16x512xf32>
    tpu.vector_store %arg11[%c0_77, %c0_78], %109 {strides = array<i32>} : memref<16x640xf32, #tpu.memory_space<vmem>>, vector<16x512xf32>,
    %c0_79 = arith.constant 0 : index
    %c0_80 = arith.constant 0 : index
    %116 = vector.load %arg11[%c0_79, %c0_80] : memref<16x640xf32, #tpu.memory_space<vmem>>, vector<16x1xf32>
    %c0_81 = arith.constant 0 : index
    %c0_82 = arith.constant 0 : index
    %117 = vector.load %arg13[%c0_81, %c0_82] : memref<64x2xf32, #tpu.memory_space<vmem>>, vector<16x1xf32>
    tpu.vector_store %arg13[%c0_81, %c0_82], %116 {strides = array<i32>} : memref<64x2xf32, #tpu.memory_space<vmem>>, vector<16x1xf32>,
    %c0_83 = arith.constant 0 : index
    %c256 = arith.constant 256 : index
    %118 = vector.load %arg11[%c0_83, %c256] : memref<16x640xf32, #tpu.memory_space<vmem>>, vector<16x1xf32>
    %c0_84 = arith.constant 0 : index
    %c1_85 = arith.constant 1 : index
    %119 = vector.load %arg13[%c0_84, %c1_85] : memref<64x2xf32, #tpu.memory_space<vmem>>, vector<16x1xf32>
    tpu.vector_store %arg13[%c0_84, %c1_85], %118 {strides = array<i32>} : memref<64x2xf32, #tpu.memory_space<vmem>>, vector<16x1xf32>,
    %c0_86 = arith.constant 0 : index
    %c4_87 = arith.constant 4 : index
    %120 = vector.load %arg11[%c0_86, %c4_87] : memref<16x640xf32, #tpu.memory_space<vmem>>, vector<16x1xf32>
    %c16_88 = arith.constant 16 : index
    %c0_89 = arith.constant 0 : index
    %121 = vector.load %arg13[%c16_88, %c0_89] : memref<64x2xf32, #tpu.memory_space<vmem>>, vector<16x1xf32>
    tpu.vector_store %arg13[%c16_88, %c0_89], %120 {strides = array<i32>} : memref<64x2xf32, #tpu.memory_space<vmem>>, vector<16x1xf32>,
    %c0_90 = arith.constant 0 : index
    %c260 = arith.constant 260 : index
    %122 = vector.load %arg11[%c0_90, %c260] : memref<16x640xf32, #tpu.memory_space<vmem>>, vector<16x1xf32>
    %c16_91 = arith.constant 16 : index
    %c1_92 = arith.constant 1 : index
    %123 = vector.load %arg13[%c16_91, %c1_92] : memref<64x2xf32, #tpu.memory_space<vmem>>, vector<16x1xf32>
    tpu.vector_store %arg13[%c16_91, %c1_92], %122 {strides = array<i32>} : memref<64x2xf32, #tpu.memory_space<vmem>>, vector<16x1xf32>,
    %c0_93 = arith.constant 0 : index
    %c64_94 = arith.constant 64 : index
    %124 = vector.load %arg11[%c0_93, %c64_94] : memref<16x640xf32, #tpu.memory_space<vmem>>, vector<16x1xf32>
    %c32_95 = arith.constant 32 : index
    %c0_96 = arith.constant 0 : index
    %125 = vector.load %arg13[%c32_95, %c0_96] : memref<64x2xf32, #tpu.memory_space<vmem>>, vector<16x1xf32>
    tpu.vector_store %arg13[%c32_95, %c0_96], %124 {strides = array<i32>} : memref<64x2xf32, #tpu.memory_space<vmem>>, vector<16x1xf32>,
    %c0_97 = arith.constant 0 : index
    %c320 = arith.constant 320 : index
    %126 = vector.load %arg11[%c0_97, %c320] : memref<16x640xf32, #tpu.memory_space<vmem>>, vector<16x1xf32>
    %c32_98 = arith.constant 32 : index
    %c1_99 = arith.constant 1 : index
    %127 = vector.load %arg13[%c32_98, %c1_99] : memref<64x2xf32, #tpu.memory_space<vmem>>, vector<16x1xf32>
    tpu.vector_store %arg13[%c32_98, %c1_99], %126 {strides = array<i32>} : memref<64x2xf32, #tpu.memory_space<vmem>>, vector<16x1xf32>,
    %c0_100 = arith.constant 0 : index
    %c68_101 = arith.constant 68 : index
    %128 = vector.load %arg11[%c0_100, %c68_101] : memref<16x640xf32, #tpu.memory_space<vmem>>, vector<16x1xf32>
    %c48 = arith.constant 48 : index
    %c0_102 = arith.constant 0 : index
    %129 = vector.load %arg13[%c48, %c0_102] : memref<64x2xf32, #tpu.memory_space<vmem>>, vector<16x1xf32>
    tpu.vector_store %arg13[%c48, %c0_102], %128 {strides = array<i32>} : memref<64x2xf32, #tpu.memory_space<vmem>>, vector<16x1xf32>,
    %c0_103 = arith.constant 0 : index
    %c324 = arith.constant 324 : index
    %130 = vector.load %arg11[%c0_103, %c324] : memref<16x640xf32, #tpu.memory_space<vmem>>, vector<16x1xf32>
    %c48_104 = arith.constant 48 : index
    %c1_105 = arith.constant 1 : index
    %131 = vector.load %arg13[%c48_104, %c1_105] : memref<64x2xf32, #tpu.memory_space<vmem>>, vector<16x1xf32>
    tpu.vector_store %arg13[%c48_104, %c1_105], %130 {strides = array<i32>} : memref<64x2xf32, #tpu.memory_space<vmem>>, vector<16x1xf32>,
    %c0_106 = arith.constant 0 : index
    %c0_107 = arith.constant 0 : index
    %132 = vector.load %arg13[%c0_106, %c0_107] : memref<64x2xf32, #tpu.memory_space<vmem>>, vector<64x2xf32>
    %133 = arith.truncf %132 : vector<64x2xf32> to vector<64x2xbf16>
    %c0_108 = arith.constant 0 : index
    %c0_109 = arith.constant 0 : index
    %134 = vector.load %arg6[%c0_108, %c0_109] : memref<32x64xbf16, #tpu.memory_space<vmem>>, vector<32x64xbf16>
    %cst_110 = arith.constant dense<0.000000e+00> : vector<32x2xf32>
    %135 = tpu.matmul %134, %133, %cst_110 {dimension_numbers = #tpu.dot_dimension_numbers<[1], [0], [0], [1], [0, 0, 1, 1], [], []>} : vector<32x64xbf16>, vector<64x2xbf16>, vector<32x2xf32> -> vector<32x2xf32>
    %c0_111 = arith.constant 0 : index
    %c0_112 = arith.constant 0 : index
    %136 = vector.load %arg7[%c0_111, %c0_112] : memref<32x1xf32, #tpu.memory_space<vmem>>, vector<32x1xf32>
    %137 = vector.broadcast %136 : vector<32x1xf32> to vector<32x2xf32>
    %138 = arith.addf %135, %137 : vector<32x2xf32>
    %cst_113 = arith.constant 0.000000e+00 : f32
    %139 = vector.broadcast %cst_113 : f32 to vector<32x2xf32>
    %140 = arith.maximumf %138, %139 : vector<32x2xf32>
    %c0_114 = arith.constant 0 : index
    %c0_115 = arith.constant 0 : index
    %141 = vector.load %arg8[%c0_114, %c0_115] : memref<32x2xf32, #tpu.memory_space<vmem>>, vector<32x2xf32>
    tpu.vector_store %arg8[%c0_114, %c0_115], %140 {strides = array<i32>} : memref<32x2xf32, #tpu.memory_space<vmem>>, vector<32x2xf32>,
    return
  }
  func.func @transform_0(%arg0: i32) -> (i32, i32) {
    %c0_i32 = arith.constant 0 : i32
    %c0_i32_0 = arith.constant 0 : i32
    %c0_i32_1 = arith.constant 0 : i32
    return %c0_i32, %c0_i32_0 : i32, i32
  }
  func.func @transform_1(%arg0: i32) -> (i32, i32) {
    %c0_i32 = arith.constant 0 : i32
    %c0_i32_0 = arith.constant 0 : i32
    %c0_i32_1 = arith.constant 0 : i32
    return %c0_i32, %c0_i32_0 : i32, i32
  }
  func.func @transform_2(%arg0: i32) -> (i32, i32) {
    %c0_i32 = arith.constant 0 : i32
    %c0_i32_0 = arith.constant 0 : i32
    %c0_i32_1 = arith.constant 0 : i32
    return %c0_i32, %c0_i32_0 : i32, i32
  }
  func.func @transform_3(%arg0: i32) -> (i32, i32) {
    %c0_i32 = arith.constant 0 : i32
    %c0_i32_0 = arith.constant 0 : i32
    %c0_i32_1 = arith.constant 0 : i32
    return %c0_i32, %c0_i32_0 : i32, i32
  }
  func.func @transform_4(%arg0: i32) -> (i32, i32) {
    %c0_i32 = arith.constant 0 : i32
    %c0_i32_0 = arith.constant 0 : i32
    %c0_i32_1 = arith.constant 0 : i32
    return %c0_i32, %c0_i32_0 : i32, i32
  }
  func.func @transform_5(%arg0: i32) -> (i32, i32) {
    %c0_i32 = arith.constant 0 : i32
    %c0_i32_0 = arith.constant 0 : i32
    %c0_i32_1 = arith.constant 0 : i32
    return %c0_i32, %c0_i32_0 : i32, i32
  }
  func.func @transform_6(%arg0: i32) -> (i32, i32) {
    %c0_i32 = arith.constant 0 : i32
    %c0_i32_0 = arith.constant 0 : i32
    %c0_i32_1 = arith.constant 0 : i32
    return %c0_i32, %c0_i32_0 : i32, i32
  }
  func.func @transform_7(%arg0: i32) -> (i32, i32) {
    %c0_i32 = arith.constant 0 : i32
    %c0_i32_0 = arith.constant 0 : i32
    %c0_i32_1 = arith.constant 0 : i32
    return %c0_i32, %c0_i32_0 : i32, i32
  }
  func.func @transform_8(%arg0: i32) -> (i32, i32) {
    %c0_i32 = arith.constant 0 : i32
    %c0_i32_0 = arith.constant 0 : i32
    %c0_i32_1 = arith.constant 0 : i32
    return %c0_i32, %c0_i32_0 : i32, i32
  }
  func.func @transform_9(%arg0: i32) -> (i32, i32) {
    %c0_i32 = arith.constant 0 : i32
    %c0_i32_0 = arith.constant 0 : i32
    %c0_i32_1 = arith.constant 0 : i32
    return %c0_i32, %c0_i32_0 : i32, i32
  }
}

</mosaic_0001>

<llo_original>
// kernel: tpu_custom_call.1
$region0: #{tpu_custom_call.1}
  #allocation0 [shape = 'u32[]', space=smem, size = 0x4, offset = 0x4, fixed_abs, tag = 'smem constant byte address 0x4 - core index']
  #allocation1 [shape = 'u32[144,128]{1,0:T(1,128)}', space=vmem, size = 0x12000, scoped, tag = 'internal scratch']
  #allocation2 [shape = 'f32[16,640]{1,0:T(8,128)}', space=vmem, size = 0xa000, scoped, tag = 'scratch operand']
  #allocation3 [shape = 'f32[16,640]{1,0:T(8,128)}', space=vmem, size = 0xa000, scoped, tag = 'scratch operand']
  #allocation4 [shape = 'f32[64,2]{1,0:T(8,128)}', space=vmem, size = 0x8000, scoped, tag = 'scratch operand']
  %s0 = inlined_call_operand.vmem [shape: f32[8,640], index: 0, kind: input, shape index: {}]
  %s1 = inlined_call_operand.hbm [shape: bf16[8,72], index: 1, kind: input, shape index: {}]
  %s2 = inlined_call_operand.vmem [shape: f32[8,1], index: 2, kind: input, shape index: {}]
  %s3 = inlined_call_operand.vmem [shape: bf16[16,72], index: 3, kind: input, shape index: {}]
  %s4 = inlined_call_operand.vmem [shape: f32[16,1], index: 4, kind: input, shape index: {}]
  %s5 = inlined_call_operand.vmem [shape: bf16[32,64], index: 5, kind: input, shape index: {}]
  %s6 = inlined_call_operand.vmem [shape: f32[32,1], index: 6, kind: input, shape index: {}]
  %s7 = inlined_call_operand.vmem [shape: f32[32,2], index: 7, kind: output, shape index: {0}]
  %s8 = inlined_call_operand.hbm [shape: s32[8,512], index: 8, kind: output, shape index: {1}]
  %s9 = inlined_call_operand.hbm [shape: s32[16,512], index: 9, kind: output, shape index: {2}]
  %10 = xla_tuple %s7, %s8, %s9
  %s11 = sld [smem:[#allocation0]]
  $region58: #{tpu_custom_call.1} parent=0
    _
  %s13 = ssub.s32 1, %s11
  %s14 = scalar_select 0, %s13, %s11
  $region1: #{tpu_custom_call.1} parent=0
    #allocation5 [shape = 'u8[2048]{0}', space=vmem, size = 0x800, scoped, tag = 'input window, operand 1, single buffered']
    #allocation6 [shape = 's32[1]{0}', space=sflag, size = 0x4, scoped, tag = 'scoped memory for tpu_custom_call.1']
    #allocation7 [shape = 's32[1]{0}', space=sflag, size = 0x4, scoped, tag = 'scoped memory for tpu_custom_call.1']
    #allocation8 [shape = 'u8[16384]{0}', space=vmem, size = 0x4000, scoped, tag = 'output window, operand 1, single buffered']
    #allocation9 [shape = 'u8[32768]{0}', space=vmem, size = 0x8000, scoped, tag = 'output window, operand 2, single buffered']
    #allocation10 [shape = 's32[1]{0}', space=sflag, size = 0x4, scoped, tag = 'scoped memory for tpu_custom_call.1']
    %15 = vsyncpa [#allocation6], 0
    %16 = vsyncpa [#allocation7], 0
    %17 = vsyncpa [#allocation10], 0
    // Predicated region
    $region2: #{tpu_custom_call.1} parent=1 // pred_check
      _
    $region3: #{tpu_custom_call.1} parent=1 // pred_check_branch
      %19 = sbr.rel (0) target = $region5
    $region4: #{tpu_custom_call.1} parent=1 // pred_region
      _
    $region5: #{tpu_custom_call.1} parent=1 // pred_fallthru
      _
    // Predicated region
    $region6: #{tpu_custom_call.1} parent=1 // pred_check
      _
    $region7: #{tpu_custom_call.1} parent=1 // pred_check_branch
      %21 = sbr.rel (0) target = $region9
    $region8: #{tpu_custom_call.1} parent=1 // pred_region
      %s23 = ssub.s32 64, 64
      %24 = vsyncadd [#allocation6], %s23
      %s26 = sshll.u32 [#allocation5], 4
      %s27 = int_to_ptr.vmem [resolvable:$true] %s26
      %29 = dma.hbm_to_vmem [thread:$0]  %s1, 64, %s27, [#allocation6]
    $region9: #{tpu_custom_call.1} parent=1 // pred_fallthru
      _
    // Predicated region
    $region10: #{tpu_custom_call.1} parent=1 // pred_check
      _
    $region11: #{tpu_custom_call.1} parent=1 // pred_check_branch
      %31 = sbr.rel (0) target = $region13
    $region12: #{tpu_custom_call.1} parent=1 // pred_region
      _
    $region13: #{tpu_custom_call.1} parent=1 // pred_fallthru
      _
    // Predicated region
    $region14: #{tpu_custom_call.1} parent=1 // pred_check
      _
    $region15: #{tpu_custom_call.1} parent=1 // pred_check_branch
      %33 = sbr.rel (0) target = $region17
    $region16: #{tpu_custom_call.1} parent=1 // pred_region
      _
    $region17: #{tpu_custom_call.1} parent=1 // pred_fallthru
      _
    // Predicated region
    $region18: #{tpu_custom_call.1} parent=1 // pred_check
      _
    $region19: #{tpu_custom_call.1} parent=1 // pred_check_branch
      %35 = sbr.rel (0) target = $region21
    $region20: #{tpu_custom_call.1} parent=1 // pred_region
      _
    $region21: #{tpu_custom_call.1} parent=1 // pred_fallthru
      _
    // Predicated region
    $region22: #{tpu_custom_call.1} parent=1 // pred_check
      _
    $region23: #{tpu_custom_call.1} parent=1 // pred_check_branch
      %37 = sbr.rel (0) target = $region25
    $region24: #{tpu_custom_call.1} parent=1 // pred_region
      _
    $region25: #{tpu_custom_call.1} parent=1 // pred_fallthru
      _
    // Predicated region
    $region26: #{tpu_custom_call.1} parent=1 // pred_check
      _
    $region27: #{tpu_custom_call.1} parent=1 // pred_check_branch
      %39 = sbr.rel (0) target = $region29
    $region28: #{tpu_custom_call.1} parent=1 // pred_region
      _
    $region29: #{tpu_custom_call.1} parent=1 // pred_fallthru
      _
    // Predicated region
    $region30: #{tpu_custom_call.1} parent=1 // pred_check
      _
    $region31: #{tpu_custom_call.1} parent=1 // pred_check_branch
      %41 = sbr.rel (0) target = $region33
    $region32: #{tpu_custom_call.1} parent=1 // pred_region
      %42 = dma.done [#allocation6], 64
    $region33: #{tpu_custom_call.1} parent=1 // pred_fallthru
      _
    %44 = vst [vmem:[#allocation2] sm:$0xff] 0.0
    %45 = vst [vmem:[#allocation2 + $0x8] sm:$0xff] 0.0
    %46 = vst [vmem:[#allocation2 + $0x10] sm:$0xff] 0.0
    %47 = vst [vmem:[#allocation2 + $0x18] sm:$0xff] 0.0
    %48 = vst [vmem:[#allocation2 + $0x20] sm:$0xff] 0.0
    %49 = vst [vmem:[#allocation2 + $0x28] sm:$0xff] 0.0
    %50 = vst [vmem:[#allocation2 + $0x30] sm:$0xff] 0.0
    %51 = vst [vmem:[#allocation2 + $0x38] sm:$0xff] 0.0
    %52 = vst [vmem:[#allocation2 + $0x40] sm:$0xff] 0.0
    %53 = vst [vmem:[#allocation2 + $0x48] sm:$0xff] 0.0
    %54 = vst [vmem:[#allocation3] sm:$0xff] 0.0
    %55 = vst [vmem:[#allocation3 + $0x8] sm:$0xff] 0.0
    %56 = vst [vmem:[#allocation3 + $0x10] sm:$0xff] 0.0
    %57 = vst [vmem:[#allocation3 + $0x18] sm:$0xff] 0.0
    %58 = vst [vmem:[#allocation3 + $0x20] sm:$0xff] 0.0
    %59 = vst [vmem:[#allocation3 + $0x28] sm:$0xff] 0.0
    %60 = vst [vmem:[#allocation3 + $0x30] sm:$0xff] 0.0
    %61 = vst [vmem:[#allocation3 + $0x38] sm:$0xff] 0.0
    %62 = vst [vmem:[#allocation3 + $0x40] sm:$0xff] 0.0
    %63 = vst [vmem:[#allocation3 + $0x48] sm:$0xff] 0.0
    %v64 = vld [vmem:[%s0] sm:$0xff]
    %v65 = vld [vmem:[%s0 + $0x8] sm:$0xff]
    %v66 = vld [vmem:[%s0 + $0x10] sm:$0xff]
    %v67 = vld [vmem:[%s0 + $0x18] sm:$0xff]
    %v68 = vld [vmem:[%s0] sm:$0xff]
    %v69 = vld [vmem:[%s0 + $0x8] sm:$0xff]
    %v70 = vld [vmem:[%s0 + $0x10] sm:$0xff]
    %v71 = vld [vmem:[%s0 + $0x18] sm:$0xff]
    %v72 = vld [vmem:[%s0 + $0x20] sm:$0xff]
    %78 = vrot.lane.b32.xlu0 %v68, 127
    %v79 = vpop.permute.xlu0 %78
    %80 = vrot.lane.b32.xlu0 %v69, 127
    %v81 = vpop.permute.xlu0 %80
    %82 = vrot.lane.b32.xlu0 %v70, 127
    %v83 = vpop.permute.xlu0 %82
    %84 = vrot.lane.b32.xlu0 %v71, 127
    %v85 = vpop.permute.xlu0 %84
    %86 = vrot.lane.b32.xlu0 %v72, 127
    %v87 = vpop.permute.xlu0 %86
    %vm88 = vcmask 1039360
    %v89 = vsel %vm88, %v79, %v81
    %v90 = vsel %vm88, %v81, %v83
    %v91 = vsel %vm88, %v83, %v85
    %v92 = vsel %vm88, %v85, %v87
    %97 = vrot.lane.b32.xlu0 %v68, 126
    %v98 = vpop.permute.xlu0 %97
    %99 = vrot.lane.b32.xlu0 %v69, 126
    %v100 = vpop.permute.xlu0 %99
    %101 = vrot.lane.b32.xlu0 %v70, 126
    %v102 = vpop.permute.xlu0 %101
    %103 = vrot.lane.b32.xlu0 %v71, 126
    %v104 = vpop.permute.xlu0 %103
    %105 = vrot.lane.b32.xlu0 %v72, 126
    %v106 = vpop.permute.xlu0 %105
    %vm107 = vcmask 1031168
    %v108 = vsel %vm107, %v98, %v100
    %v109 = vsel %vm107, %v100, %v102
    %v110 = vsel %vm107, %v102, %v104
    %v111 = vsel %vm107, %v104, %v106
    %116 = vrot.lane.b32.xlu0 %v68, 112
    %v117 = vpop.permute.xlu0 %116
    %118 = vrot.lane.b32.xlu0 %v69, 112
    %v119 = vpop.permute.xlu0 %118
    %120 = vrot.lane.b32.xlu0 %v70, 112
    %v121 = vpop.permute.xlu0 %120
    %122 = vrot.lane.b32.xlu0 %v71, 112
    %v123 = vpop.permute.xlu0 %122
    %124 = vrot.lane.b32.xlu0 %v72, 112
    %v125 = vpop.permute.xlu0 %124
    %vm126 = vcmask 916480
    %v127 = vsel %vm126, %v117, %v119
    %v128 = vsel %vm126, %v119, %v121
    %v129 = vsel %vm126, %v121, %v123
    %v130 = vsel %vm126, %v123, %v125
    %135 = vrot.lane.b32.xlu0 %v68, 111
    %v136 = vpop.permute.xlu0 %135
    %137 = vrot.lane.b32.xlu0 %v69, 111
    %v138 = vpop.permute.xlu0 %137
    %139 = vrot.lane.b32.xlu0 %v70, 111
    %v140 = vpop.permute.xlu0 %139
    %141 = vrot.lane.b32.xlu0 %v71, 111
    %v142 = vpop.permute.xlu0 %141
    %143 = vrot.lane.b32.xlu0 %v72, 111
    %v144 = vpop.permute.xlu0 %143
    %vm145 = vcmask 908288
    %v146 = vsel %vm145, %v136, %v138
    %v147 = vsel %vm145, %v138, %v140
    %v148 = vsel %vm145, %v140, %v142
    %v149 = vsel %vm145, %v142, %v144
    %154 = vrot.lane.b32.xlu0 %v68, 110
    %v155 = vpop.permute.xlu0 %154
    %156 = vrot.lane.b32.xlu0 %v69, 110
    %v157 = vpop.permute.xlu0 %156
    %158 = vrot.lane.b32.xlu0 %v70, 110
    %v159 = vpop.permute.xlu0 %158
    %160 = vrot.lane.b32.xlu0 %v71, 110
    %v161 = vpop.permute.xlu0 %160
    %162 = vrot.lane.b32.xlu0 %v72, 110
    %v163 = vpop.permute.xlu0 %162
    %vm164 = vcmask 900096
    %v165 = vsel %vm164, %v155, %v157
    %v166 = vsel %vm164, %v157, %v159
    %v167 = vsel %vm164, %v159, %v161
    %v168 = vsel %vm164, %v161, %v163
    %173 = vrot.lane.b32.xlu0 %v68, 96
    %v174 = vpop.permute.xlu0 %173
    %175 = vrot.lane.b32.xlu0 %v69, 96
    %v176 = vpop.permute.xlu0 %175
    %177 = vrot.lane.b32.xlu0 %v70, 96
    %v178 = vpop.permute.xlu0 %177
    %179 = vrot.lane.b32.xlu0 %v71, 96
    %v180 = vpop.permute.xlu0 %179
    %181 = vrot.lane.b32.xlu0 %v72, 96
    %v182 = vpop.permute.xlu0 %181
    %vm183 = vcmask 785408
    %v184 = vsel %vm183, %v174, %v176
    %v185 = vsel %vm183, %v176, %v178
    %v186 = vsel %vm183, %v178, %v180
    %v187 = vsel %vm183, %v180, %v182
    %192 = vrot.lane.b32.xlu0 %v68, 95
    %v193 = vpop.permute.xlu0 %192
    %194 = vrot.lane.b32.xlu0 %v69, 95
    %v195 = vpop.permute.xlu0 %194
    %196 = vrot.lane.b32.xlu0 %v70, 95
    %v197 = vpop.permute.xlu0 %196
    %198 = vrot.lane.b32.xlu0 %v71, 95
    %v199 = vpop.permute.xlu0 %198
    %200 = vrot.lane.b32.xlu0 %v72, 95
    %v201 = vpop.permute.xlu0 %200
    %vm202 = vcmask 777216
    %v203 = vsel %vm202, %v193, %v195
    %v204 = vsel %vm202, %v195, %v197
    %v205 = vsel %vm202, %v197, %v199
    %v206 = vsel %vm202, %v199, %v201
    %211 = vrot.lane.b32.xlu0 %v68, 94
    %v212 = vpop.permute.xlu0 %211
    %213 = vrot.lane.b32.xlu0 %v69, 94
    %v214 = vpop.permute.xlu0 %213
    %215 = vrot.lane.b32.xlu0 %v70, 94
    %v216 = vpop.permute.xlu0 %215
    %217 = vrot.lane.b32.xlu0 %v71, 94
    %v218 = vpop.permute.xlu0 %217
    %219 = vrot.lane.b32.xlu0 %v72, 94
    %v220 = vpop.permute.xlu0 %219
    %vm221 = vcmask 769024
    %v222 = vsel %vm221, %v212, %v214
    %v223 = vsel %vm221, %v214, %v216
    %v224 = vsel %vm221, %v216, %v218
    %v225 = vsel %vm221, %v218, %v220
    %v230 = vpack.c.bf16 %v89, %v64
    %v231 = vpack.c.bf16 %v90, %v65
    %v232 = vpack.c.bf16 %v91, %v66
    %v233 = vpack.c.bf16 %v92, %v67
    %v234 = vpack.c.bf16 %v127, %v108
    %v235 = vpack.c.bf16 %v128, %v109
    %v236 = vpack.c.bf16 %v129, %v110
    %v237 = vpack.c.bf16 %v130, %v111
    %v238 = vpack.c.bf16 %v165, %v146
    %v239 = vpack.c.bf16 %v166, %v147
    %v240 = vpack.c.bf16 %v167, %v148
    %v241 = vpack.c.bf16 %v168, %v149
    %v242 = vpack.c.bf16 %v203, %v184
    %v243 = vpack.c.bf16 %v204, %v185
    %v244 = vpack.c.bf16 %v205, %v186
    %v245 = vpack.c.bf16 %v206, %v187
    %v246 = vpack.c.bf16 %v222, %v222
    %v247 = vpack.c.bf16 %v223, %v223
    %v248 = vpack.c.bf16 %v224, %v224
    %v249 = vpack.c.bf16 %v225, %v225
    %v250 = vld [vmem:[#allocation5] sm:$0xf]
    %v251 = vld [vmem:[%s2] sm:$0xff]
    %253 = vset.pattern.permute.xlu0 0
    %254 = vperm.xlu0 %253, %v251
    %v255 = vpop.permute.xlu0 %254
    %vm257 = vcmask 588800
    %v259 = vsel %vm257, %v250, 0
    %vm261 = vcmask 1043456
    %v263 = vsel %vm261, %v246, 0
    %v266 = vsel %vm261, %v247, 0
    %v269 = vsel %vm261, %v248, 0
    %v272 = vsel %vm261, %v249, 0
    %274 = vmatprep.subr.bf16.mxu0 0
    %275 = vmatpush1.bf16.msra.mxu0 0
    %276 = vmatprep.subr.bf16.mxu0 0
    %277 = vmatpush1.bf16.msra.mxu0 0
    %278 = vmatprep.subr.bf16.mxu0 0
    %279 = vmatpush1.bf16.msra.mxu0 0
    %280 = vmatprep.subr.bf16.mxu0 %v266
    %281 = vmatpush1.bf16.msra.mxu0 %v263
    %282 = vmatprep.subr.bf16.mxu0 %v243
    %283 = vmatpush1.bf16.msra.mxu0 %v242
    %284 = vmatprep.subr.bf16.mxu0 %v239
    %285 = vmatpush1.bf16.msra.mxu0 %v238
    %286 = vmatprep.subr.bf16.mxu0 %v235
    %287 = vmatpush1.bf16.msra.mxu0 %v234
    %288 = vmatprep.subr.bf16.mxu0 %v231
    %289 = vmatpush1.bf16.msra.mxu0 %v230
    %290 = vmatprep.subr.bf16.mxu0 0
    %291 = vmatpush2.bf16.msra.mxu0 0
    %292 = vmatprep.subr.bf16.mxu0 0
    %293 = vmatpush2.bf16.msra.mxu0 0
    %294 = vmatprep.subr.bf16.mxu0 0
    %295 = vmatpush2.bf16.msra.mxu0 0
    %296 = vmatprep.subr.bf16.mxu0 0
    %297 = vmatpush2.bf16.msra.mxu0 0
    %298 = vmatprep.subr.bf16.mxu0 0
    %299 = vmatpush2.bf16.msra.mxu0 0
    %300 = vmatprep.subr.bf16.mxu0 0
    %301 = vmatpush2.bf16.msra.mxu0 0
    %302 = vmatprep.subr.bf16.mxu0 0
    %303 = vmatpush2.bf16.msra.mxu0 0
    %304 = vmatprep.subr.bf16.mxu0 0
    %305 = vmatpush2.bf16.msra.mxu0 0
    %306 = vmatprep.mubr.bf16.mxu0 0
    %307 = vmatmul.mubr.bf16.gmra.mxu0 %v259
    %v308 = vpop.f32.mrf.mxu0
    %v309 = vadd.f32 %v255, %v308
    %v310 = vpop.f32.mrf.mxu0
    %v311 = vadd.f32 %v255, %v310
    %v312 = vpop.f32.mrf.mxu0
    %v313 = vpop.f32.mrf.mxu0
    %314 = vdwg.mxu0
    %315 = vmatprep.subr.bf16.mxu0 0
    %316 = vmatpush1.bf16.msra.mxu0 0
    %317 = vmatprep.subr.bf16.mxu0 0
    %318 = vmatpush1.bf16.msra.mxu0 0
    %319 = vmatprep.subr.bf16.mxu0 0
    %320 = vmatpush1.bf16.msra.mxu0 0
    %321 = vmatprep.subr.bf16.mxu0 %v272
    %322 = vmatpush1.bf16.msra.mxu0 %v269
    %323 = vmatprep.subr.bf16.mxu0 %v245
    %324 = vmatpush1.bf16.msra.mxu0 %v244
    %325 = vmatprep.subr.bf16.mxu0 %v241
    %326 = vmatpush1.bf16.msra.mxu0 %v240
    %327 = vmatprep.subr.bf16.mxu0 %v237
    %328 = vmatpush1.bf16.msra.mxu0 %v236
    %329 = vmatprep.subr.bf16.mxu0 %v233
    %330 = vmatpush1.bf16.msra.mxu0 %v232
    %331 = vmatprep.subr.bf16.mxu0 0
    %332 = vmatpush2.bf16.msra.mxu0 0
    %333 = vmatprep.subr.bf16.mxu0 0
    %334 = vmatpush2.bf16.msra.mxu0 0
    %335 = vmatprep.subr.bf16.mxu0 0
    %336 = vmatpush2.bf16.msra.mxu0 0
    %337 = vmatprep.subr.bf16.mxu0 0
    %338 = vmatpush2.bf16.msra.mxu0 0
    %339 = vmatprep.subr.bf16.mxu0 0
    %340 = vmatpush2.bf16.msra.mxu0 0
    %341 = vmatprep.subr.bf16.mxu0 0
    %342 = vmatpush2.bf16.msra.mxu0 0
    %343 = vmatprep.subr.bf16.mxu0 0
    %344 = vmatpush2.bf16.msra.mxu0 0
    %345 = vmatprep.subr.bf16.mxu0 0
    %346 = vmatpush2.bf16.msra.mxu0 0
    %347 = vmatprep.mubr.bf16.mxu0 0
    %348 = vmatmul.mubr.bf16.gmra.mxu0 %v259
    %v349 = vpop.f32.mrf.mxu0
    %v350 = vadd.f32 %v255, %v349
    %v351 = vpop.f32.mrf.mxu0
    %v352 = vadd.f32 %v255, %v351
    %v353 = vpop.f32.mrf.mxu0
    %v354 = vpop.f32.mrf.mxu0
    %355 = vdwg.mxu0
    %v356 = vmax.f32 %v309, 0.0
    %v357 = vmax.f32 %v311, 0.0
    %v358 = vmax.f32 %v350, 0.0
    %v359 = vmax.f32 %v352, 0.0
    %360 = vst [vmem:[#allocation3] sm:$0xff] %v356
    %361 = vst [vmem:[#allocation3 + $0x8] sm:$0xff] %v357
    %362 = vst [vmem:[#allocation3 + $0x10] sm:$0xff] %v358
    %363 = vst [vmem:[#allocation3 + $0x18] sm:$0xff] %v359
    %v364 = vlaneseq
    %v365 = vand.u32 %v364, 127
    %v366 = vadd.s32 %v365, 128
    %v367 = vadd.s32 %v365, 256
    %v368 = vadd.s32 %v365, 384
    %v369 = vand.u32 %v365, 255
    %v370 = vand.u32 %v366, 255
    %v371 = vand.u32 %v367, 255
    %v372 = vand.u32 %v368, 255
    %v373 = vshra.s32 %v369, 5
    %v374 = vshra.s32 %v370, 5
    %v375 = vshra.s32 %v371, 5
    %v376 = vshra.s32 %v372, 5
    %v377 = vand.u32 %v365, 31
    %v378 = vand.u32 %v366, 31
    %v379 = vand.u32 %v367, 31
    %v380 = vand.u32 %v368, 31
    %v381 = vshra.s32 %v377, 1
    %v382 = vshra.s32 %v378, 1
    %v383 = vshra.s32 %v379, 1
    %v384 = vshra.s32 %v380, 1
    %v385 = vmul.u32 %v373, 2
    %v386 = vmul.u32 %v374, 2
    %v387 = vmul.u32 %v375, 2
    %v388 = vmul.u32 %v376, 2
    %v389 = vmul.u32 %v385, 14
    %v390 = vmul.u32 %v386, 14
    %v391 = vmul.u32 %v387, 14
    %v392 = vmul.u32 %v388, 14
    %v393 = vmul.u32 %v381, 2
    %v394 = vmul.u32 %v382, 2
    %v395 = vmul.u32 %v383, 2
    %v396 = vmul.u32 %v384, 2
    %v397 = vadd.s32 %v389, %v393
    %v398 = vadd.s32 %v390, %v394
    %v399 = vadd.s32 %v391, %v395
    %v400 = vadd.s32 %v392, %v396
    %v401 = vld [vmem:[#allocation3] sm:$0xff]
    %v402 = vld [vmem:[#allocation3 + $0x8] sm:$0xff]
    %v403 = vld [vmem:[#allocation3 + $0x10] sm:$0xff]
    %v404 = vld [vmem:[#allocation3 + $0x18] sm:$0xff]
    %v405 = vld [vmem:[#allocation3 + $0x20] sm:$0xff]
    %410 = vrot.lane.b32.xlu0 %v401, 1
    %v411 = vpop.permute.xlu0 %410
    %412 = vrot.lane.b32.xlu0 %v402, 1
    %v413 = vpop.permute.xlu0 %412
    %414 = vrot.lane.b32.xlu0 %v403, 1
    %v415 = vpop.permute.xlu0 %414
    %416 = vrot.lane.b32.xlu0 %v404, 1
    %v417 = vpop.permute.xlu0 %416
    %vm418 = vcmask 7168
    %v419 = vsel %vm418, %v411, %v413
    %v420 = vsel %vm418, %v413, %v415
    %v421 = vsel %vm418, %v415, %v417
    %vm427 = vcmp.gt.f32.partialorder %v401, %v411
    %vm428 = vcmp.gt.f32.partialorder %v402, %v419
    %vm429 = vcmp.gt.f32.partialorder %v403, %v420
    %vm430 = vcmp.gt.f32.partialorder %v404, %v421
    %vm431 = vcmp.gt.f32.partialorder %v405, %v417
    %v432 = vsel %vm427, %v401, %v411
    %v433 = vsel %vm428, %v402, %v419
    %v434 = vsel %vm429, %v403, %v420
    %v435 = vsel %vm430, %v404, %v421
    %v436 = vsel %vm431, %v405, %v417
    %v437 = vsel %vm427, 1, 0
    %v438 = vsel %vm428, 1, 0
    %v439 = vsel %vm429, 1, 0
    %v440 = vsel %vm430, 1, 0
    %v441 = vsel %vm431, 1, 0
    %447 = vrot.lane.b32.xlu0 %v432, 15
    %v448 = vpop.permute.xlu0 %447
    %449 = vrot.lane.b32.xlu0 %v433, 15
    %v450 = vpop.permute.xlu0 %449
    %451 = vrot.lane.b32.xlu0 %v434, 15
    %v452 = vpop.permute.xlu0 %451
    %453 = vrot.lane.b32.xlu0 %v435, 15
    %v454 = vpop.permute.xlu0 %453
    %455 = vrot.lane.b32.xlu0 %v436, 15
    %v456 = vpop.permute.xlu0 %455
    %vm457 = vcmask 121856
    %v458 = vsel %vm457, %v448, %v450
    %v459 = vsel %vm457, %v450, %v452
    %v460 = vsel %vm457, %v452, %v454
    %v461 = vsel %vm457, %v454, %v456
    %vm467 = vcmp.gt.f32.partialorder %v401, %v448
    %vm468 = vcmp.gt.f32.partialorder %v402, %v458
    %vm469 = vcmp.gt.f32.partialorder %v403, %v459
    %vm470 = vcmp.gt.f32.partialorder %v404, %v460
    %vm471 = vcmp.gt.f32.partialorder %v405, %v461
    %v472 = vsel %vm467, %v401, %v448
    %v473 = vsel %vm468, %v402, %v458
    %v474 = vsel %vm469, %v403, %v459
    %v475 = vsel %vm470, %v404, %v460
    %v476 = vsel %vm471, %v405, %v461
    %477 = vrot.lane.b32.xlu0 %v437, 15
    %v478 = vpop.permute.xlu0 %477
    %479 = vrot.lane.b32.xlu0 %v438, 15
    %v480 = vpop.permute.xlu0 %479
    %481 = vrot.lane.b32.xlu0 %v439, 15
    %v482 = vpop.permute.xlu0 %481
    %483 = vrot.lane.b32.xlu0 %v440, 15
    %v484 = vpop.permute.xlu0 %483
    %485 = vrot.lane.b32.xlu0 %v441, 15
    %v486 = vpop.permute.xlu0 %485
    %v487 = vsel %vm457, %v478, %v480
    %v488 = vsel %vm457, %v480, %v482
    %v489 = vsel %vm457, %v482, %v484
    %v490 = vsel %vm457, %v484, %v486
    %v491 = vsel %vm467, 14, %v478
    %v492 = vsel %vm468, 14, %v487
    %v493 = vsel %vm469, 14, %v488
    %v494 = vsel %vm470, 14, %v489
    %v495 = vsel %vm471, 14, %v490
    %501 = vrot.lane.b32.xlu0 %v472, 1
    %v502 = vpop.permute.xlu0 %501
    %503 = vrot.lane.b32.xlu0 %v473, 1
    %v504 = vpop.permute.xlu0 %503
    %505 = vrot.lane.b32.xlu0 %v474, 1
    %v506 = vpop.permute.xlu0 %505
    %507 = vrot.lane.b32.xlu0 %v475, 1
    %v508 = vpop.permute.xlu0 %507
    %509 = vrot.lane.b32.xlu0 %v476, 1
    %v510 = vpop.permute.xlu0 %509
    %v511 = vsel %vm418, %v502, %v504
    %v512 = vsel %vm418, %v504, %v506
    %v513 = vsel %vm418, %v506, %v508
    %v514 = vsel %vm418, %v508, %v510
    %vm520 = vcmp.gt.f32.partialorder %v401, %v502
    %vm521 = vcmp.gt.f32.partialorder %v402, %v511
    %vm522 = vcmp.gt.f32.partialorder %v403, %v512
    %vm523 = vcmp.gt.f32.partialorder %v404, %v513
    %vm524 = vcmp.gt.f32.partialorder %v405, %v514
    %v525 = vsel %vm520, %v401, %v502
    %v526 = vsel %vm521, %v402, %v511
    %v527 = vsel %vm522, %v403, %v512
    %v528 = vsel %vm523, %v404, %v513
    %v529 = vsel %vm524, %v405, %v514
    %530 = vrot.lane.b32.xlu0 %v491, 1
    %v531 = vpop.permute.xlu0 %530
    %532 = vrot.lane.b32.xlu0 %v492, 1
    %v533 = vpop.permute.xlu0 %532
    %534 = vrot.lane.b32.xlu0 %v493, 1
    %v535 = vpop.permute.xlu0 %534
    %536 = vrot.lane.b32.xlu0 %v494, 1
    %v537 = vpop.permute.xlu0 %536
    %538 = vrot.lane.b32.xlu0 %v495, 1
    %v539 = vpop.permute.xlu0 %538
    %v540 = vsel %vm418, %v531, %v533
    %v541 = vsel %vm418, %v533, %v535
    %v542 = vsel %vm418, %v535, %v537
    %v543 = vsel %vm418, %v537, %v539
    %v544 = vsel %vm520, 15, %v531
    %v545 = vsel %vm521, 15, %v540
    %v546 = vsel %vm522, 15, %v541
    %v547 = vsel %vm523, 15, %v542
    %v548 = vsel %vm524, 15, %v543
    %549 = vrot.lane.b32.xlu0 %v544, 111
    %v550 = vpop.permute.xlu0 %549
    %551 = vrot.lane.b32.xlu0 %v545, 111
    %v552 = vpop.permute.xlu0 %551
    %553 = vrot.lane.b32.xlu0 %v546, 111
    %v554 = vpop.permute.xlu0 %553
    %555 = vrot.lane.b32.xlu0 %v547, 111
    %v556 = vpop.permute.xlu0 %555
    %557 = vrot.lane.b32.xlu0 %v548, 111
    %v558 = vpop.permute.xlu0 %557
    %v559 = vsel %vm145, %v550, %v552
    %v560 = vsel %vm145, %v552, %v554
    %v561 = vsel %vm145, %v554, %v556
    %v562 = vsel %vm145, %v556, %v558
    %v563 = vadd.s32 %v397, %v559
    %v564 = vadd.s32 %v398, %v560
    %v565 = vadd.s32 %v399, %v561
    %v566 = vadd.s32 %v400, %v562
    %567 = vst [vmem:[#allocation8] sm:$0xff] %v563
    %568 = vst [vmem:[#allocation8 + $0x8] sm:$0xff] %v564
    %569 = vst [vmem:[#allocation8 + $0x10] sm:$0xff] %v565
    %570 = vst [vmem:[#allocation8 + $0x18] sm:$0xff] %v566
    %576 = vrot.lane.b32.xlu0 %v525, 111
    %v577 = vpop.permute.xlu0 %576
    %578 = vrot.lane.b32.xlu0 %v526, 111
    %v579 = vpop.permute.xlu0 %578
    %580 = vrot.lane.b32.xlu0 %v527, 111
    %v581 = vpop.permute.xlu0 %580
    %582 = vrot.lane.b32.xlu0 %v528, 111
    %v583 = vpop.permute.xlu0 %582
    %584 = vrot.lane.b32.xlu0 %v529, 111
    %v585 = vpop.permute.xlu0 %584
    %v586 = vsel %vm145, %v577, %v579
    %v587 = vsel %vm145, %v579, %v581
    %v588 = vsel %vm145, %v581, %v583
    %v589 = vsel %vm145, %v583, %v585
    %594 = vst [vmem:[#allocation2] sm:$0xff] %v586
    %595 = vst [vmem:[#allocation2 + $0x8] sm:$0xff] %v587
    %596 = vst [vmem:[#allocation2 + $0x10] sm:$0xff] %v588
    %597 = vst [vmem:[#allocation2 + $0x18] sm:$0xff] %v589
    %v598 = vld [vmem:[#allocation2] sm:$0xff]
    %v599 = vld [vmem:[#allocation2 + $0x8] sm:$0xff]
    %v600 = vld [vmem:[#allocation2 + $0x10] sm:$0xff]
    %v601 = vld [vmem:[#allocation2 + $0x18] sm:$0xff]
    %v602 = vld [vmem:[#allocation2 + $0x20] sm:$0xff]
    %608 = vrot.lane.b32.xlu0 %v598, 126
    %v609 = vpop.permute.xlu0 %608
    %610 = vrot.lane.b32.xlu0 %v599, 126
    %v611 = vpop.permute.xlu0 %610
    %612 = vrot.lane.b32.xlu0 %v600, 126
    %v613 = vpop.permute.xlu0 %612
    %614 = vrot.lane.b32.xlu0 %v601, 126
    %v615 = vpop.permute.xlu0 %614
    %616 = vrot.lane.b32.xlu0 %v602, 126
    %v617 = vpop.permute.xlu0 %616
    %v618 = vsel %vm107, %v609, %v611
    %v619 = vsel %vm107, %v611, %v613
    %v620 = vsel %vm107, %v613, %v615
    %v621 = vsel %vm107, %v615, %v617
    %626 = vrot.lane.b32.xlu0 %v598, 124
    %v627 = vpop.permute.xlu0 %626
    %628 = vrot.lane.b32.xlu0 %v599, 124
    %v629 = vpop.permute.xlu0 %628
    %630 = vrot.lane.b32.xlu0 %v600, 124
    %v631 = vpop.permute.xlu0 %630
    %632 = vrot.lane.b32.xlu0 %v601, 124
    %v633 = vpop.permute.xlu0 %632
    %634 = vrot.lane.b32.xlu0 %v602, 124
    %v635 = vpop.permute.xlu0 %634
    %vm636 = vcmask 1014784
    %v637 = vsel %vm636, %v627, %v629
    %v638 = vsel %vm636, %v629, %v631
    %v639 = vsel %vm636, %v631, %v633
    %v640 = vsel %vm636, %v633, %v635
    %645 = vrot.lane.b32.xlu0 %v598, 96
    %v646 = vpop.permute.xlu0 %645
    %647 = vrot.lane.b32.xlu0 %v599, 96
    %v648 = vpop.permute.xlu0 %647
    %649 = vrot.lane.b32.xlu0 %v600, 96
    %v650 = vpop.permute.xlu0 %649
    %651 = vrot.lane.b32.xlu0 %v601, 96
    %v652 = vpop.permute.xlu0 %651
    %653 = vrot.lane.b32.xlu0 %v602, 96
    %v654 = vpop.permute.xlu0 %653
    %v655 = vsel %vm183, %v646, %v648
    %v656 = vsel %vm183, %v648, %v650
    %v657 = vsel %vm183, %v650, %v652
    %v658 = vsel %vm183, %v652, %v654
    %663 = vrot.lane.b32.xlu0 %v598, 94
    %v664 = vpop.permute.xlu0 %663
    %665 = vrot.lane.b32.xlu0 %v599, 94
    %v666 = vpop.permute.xlu0 %665
    %667 = vrot.lane.b32.xlu0 %v600, 94
    %v668 = vpop.permute.xlu0 %667
    %669 = vrot.lane.b32.xlu0 %v601, 94
    %v670 = vpop.permute.xlu0 %669
    %671 = vrot.lane.b32.xlu0 %v602, 94
    %v672 = vpop.permute.xlu0 %671
    %v673 = vsel %vm221, %v664, %v666
    %v674 = vsel %vm221, %v666, %v668
    %v675 = vsel %vm221, %v668, %v670
    %v676 = vsel %vm221, %v670, %v672
    %681 = vrot.lane.b32.xlu0 %v598, 92
    %v682 = vpop.permute.xlu0 %681
    %683 = vrot.lane.b32.xlu0 %v599, 92
    %v684 = vpop.permute.xlu0 %683
    %685 = vrot.lane.b32.xlu0 %v600, 92
    %v686 = vpop.permute.xlu0 %685
    %687 = vrot.lane.b32.xlu0 %v601, 92
    %v688 = vpop.permute.xlu0 %687
    %689 = vrot.lane.b32.xlu0 %v602, 92
    %v690 = vpop.permute.xlu0 %689
    %vm691 = vcmask 752640
    %v692 = vsel %vm691, %v682, %v684
    %v693 = vsel %vm691, %v684, %v686
    %v694 = vsel %vm691, %v686, %v688
    %v695 = vsel %vm691, %v688, %v690
    %700 = vrot.lane.b32.xlu0 %v598, 64
    %v701 = vpop.permute.xlu0 %700
    %702 = vrot.lane.b32.xlu0 %v599, 64
    %v703 = vpop.permute.xlu0 %702
    %704 = vrot.lane.b32.xlu0 %v600, 64
    %v705 = vpop.permute.xlu0 %704
    %706 = vrot.lane.b32.xlu0 %v601, 64
    %v707 = vpop.permute.xlu0 %706
    %708 = vrot.lane.b32.xlu0 %v602, 64
    %v709 = vpop.permute.xlu0 %708
    %vm710 = vcmask 523264
    %v711 = vsel %vm710, %v701, %v703
    %v712 = vsel %vm710, %v703, %v705
    %v713 = vsel %vm710, %v705, %v707
    %v714 = vsel %vm710, %v707, %v709
    %719 = vrot.lane.b32.xlu0 %v598, 62
    %v720 = vpop.permute.xlu0 %719
    %721 = vrot.lane.b32.xlu0 %v599, 62
    %v722 = vpop.permute.xlu0 %721
    %723 = vrot.lane.b32.xlu0 %v600, 62
    %v724 = vpop.permute.xlu0 %723
    %725 = vrot.lane.b32.xlu0 %v601, 62
    %v726 = vpop.permute.xlu0 %725
    %727 = vrot.lane.b32.xlu0 %v602, 62
    %v728 = vpop.permute.xlu0 %727
    %vm729 = vcmask 506880
    %v730 = vsel %vm729, %v720, %v722
    %v731 = vsel %vm729, %v722, %v724
    %v732 = vsel %vm729, %v724, %v726
    %v733 = vsel %vm729, %v726, %v728
    %738 = vrot.lane.b32.xlu0 %v598, 60
    %v739 = vpop.permute.xlu0 %738
    %740 = vrot.lane.b32.xlu0 %v599, 60
    %v741 = vpop.permute.xlu0 %740
    %742 = vrot.lane.b32.xlu0 %v600, 60
    %v743 = vpop.permute.xlu0 %742
    %744 = vrot.lane.b32.xlu0 %v601, 60
    %v745 = vpop.permute.xlu0 %744
    %746 = vrot.lane.b32.xlu0 %v602, 60
    %v747 = vpop.permute.xlu0 %746
    %vm748 = vcmask 490496
    %v749 = vsel %vm748, %v739, %v741
    %v750 = vsel %vm748, %v741, %v743
    %v751 = vsel %vm748, %v743, %v745
    %v752 = vsel %vm748, %v745, %v747
    %v757 = vpack.c.bf16 %v618, %v598
    %v758 = vpack.c.bf16 %v619, %v599
    %v759 = vpack.c.bf16 %v620, %v600
    %v760 = vpack.c.bf16 %v621, %v601
    %v761 = vpack.c.bf16 %v655, %v637
    %v762 = vpack.c.bf16 %v656, %v638
    %v763 = vpack.c.bf16 %v657, %v639
    %v764 = vpack.c.bf16 %v658, %v640
    %v765 = vpack.c.bf16 %v692, %v673
    %v766 = vpack.c.bf16 %v693, %v674
    %v767 = vpack.c.bf16 %v694, %v675
    %v768 = vpack.c.bf16 %v695, %v676
    %v769 = vpack.c.bf16 %v730, %v711
    %v770 = vpack.c.bf16 %v731, %v712
    %v771 = vpack.c.bf16 %v732, %v713
    %v772 = vpack.c.bf16 %v733, %v714
    %v773 = vpack.c.bf16 %v749, %v749
    %v774 = vpack.c.bf16 %v750, %v750
    %v775 = vpack.c.bf16 %v751, %v751
    %v776 = vpack.c.bf16 %v752, %v752
    %v777 = vld [vmem:[%s3] sm:$0xf]
    %v778 = vld [vmem:[%s3 + $0x4] sm:$0xf]
    %v779 = vld [vmem:[%s4] sm:$0xff]
    %v780 = vld [vmem:[%s4 + $0x8] sm:$0xff]
    %782 = vset.pattern.permute.xlu0 0
    %783 = vperm.xlu0 %782, %v779
    %v784 = vpop.permute.xlu0 %783
    %787 = vset.pattern.permute.xlu0 0
    %788 = vperm.xlu0 %787, %v780
    %v789 = vpop.permute.xlu0 %788
    %v793 = vunpack.c.l.b16 %v777
    %v794 = vunpack.c.l.b16 %v778
    %v795 = vpack.c.b16 %v794, %v793
    %v797 = vsel %vm257, %v795, 0
    %v800 = vsel %vm261, %v773, 0
    %v803 = vsel %vm261, %v774, 0
    %v806 = vsel %vm261, %v775, 0
    %v809 = vsel %vm261, %v776, 0
    %811 = vmatprep.subr.bf16.mxu0 0
    %812 = vmatpush1.bf16.msra.mxu0 0
    %813 = vmatprep.subr.bf16.mxu0 0
    %814 = vmatpush1.bf16.msra.mxu0 0
    %815 = vmatprep.subr.bf16.mxu0 0
    %816 = vmatpush1.bf16.msra.mxu0 0
    %817 = vmatprep.subr.bf16.mxu0 %v803
    %818 = vmatpush1.bf16.msra.mxu0 %v800
    %819 = vmatprep.subr.bf16.mxu0 %v770
    %820 = vmatpush1.bf16.msra.mxu0 %v769
    %821 = vmatprep.subr.bf16.mxu0 %v766
    %822 = vmatpush1.bf16.msra.mxu0 %v765
    %823 = vmatprep.subr.bf16.mxu0 %v762
    %824 = vmatpush1.bf16.msra.mxu0 %v761
    %825 = vmatprep.subr.bf16.mxu0 %v758
    %826 = vmatpush1.bf16.msra.mxu0 %v757
    %827 = vmatprep.subr.bf16.mxu0 0
    %828 = vmatpush2.bf16.msra.mxu0 0
    %829 = vmatprep.subr.bf16.mxu0 0
    %830 = vmatpush2.bf16.msra.mxu0 0
    %831 = vmatprep.subr.bf16.mxu0 0
    %832 = vmatpush2.bf16.msra.mxu0 0
    %833 = vmatprep.subr.bf16.mxu0 0
    %834 = vmatpush2.bf16.msra.mxu0 0
    %835 = vmatprep.subr.bf16.mxu0 0
    %836 = vmatpush2.bf16.msra.mxu0 0
    %837 = vmatprep.subr.bf16.mxu0 0
    %838 = vmatpush2.bf16.msra.mxu0 0
    %839 = vmatprep.subr.bf16.mxu0 0
    %840 = vmatpush2.bf16.msra.mxu0 0
    %841 = vmatprep.subr.bf16.mxu0 0
    %842 = vmatpush2.bf16.msra.mxu0 0
    %843 = vmatprep.mubr.bf16.mxu0 0
    %844 = vmatmul.mubr.bf16.gmra.mxu0 %v797
    %v845 = vpop.f32.mrf.mxu0
    %v846 = vadd.f32 %v784, %v845
    %v847 = vpop.f32.mrf.mxu0
    %v848 = vadd.f32 %v784, %v847
    %v849 = vpop.f32.mrf.mxu0
    %v850 = vadd.f32 %v789, %v849
    %v851 = vpop.f32.mrf.mxu0
    %v852 = vadd.f32 %v789, %v851
    %853 = vdwg.mxu0
    %854 = vmatprep.subr.bf16.mxu0 0
    %855 = vmatpush1.bf16.msra.mxu0 0
    %856 = vmatprep.subr.bf16.mxu0 0
    %857 = vmatpush1.bf16.msra.mxu0 0
    %858 = vmatprep.subr.bf16.mxu0 0
    %859 = vmatpush1.bf16.msra.mxu0 0
    %860 = vmatprep.subr.bf16.mxu0 %v809
    %861 = vmatpush1.bf16.msra.mxu0 %v806
    %862 = vmatprep.subr.bf16.mxu0 %v772
    %863 = vmatpush1.bf16.msra.mxu0 %v771
    %864 = vmatprep.subr.bf16.mxu0 %v768
    %865 = vmatpush1.bf16.msra.mxu0 %v767
    %866 = vmatprep.subr.bf16.mxu0 %v764
    %867 = vmatpush1.bf16.msra.mxu0 %v763
    %868 = vmatprep.subr.bf16.mxu0 %v760
    %869 = vmatpush1.bf16.msra.mxu0 %v759
    %870 = vmatprep.subr.bf16.mxu0 0
    %871 = vmatpush2.bf16.msra.mxu0 0
    %872 = vmatprep.subr.bf16.mxu0 0
    %873 = vmatpush2.bf16.msra.mxu0 0
    %874 = vmatprep.subr.bf16.mxu0 0
    %875 = vmatpush2.bf16.msra.mxu0 0
    %876 = vmatprep.subr.bf16.mxu0 0
    %877 = vmatpush2.bf16.msra.mxu0 0
    %878 = vmatprep.subr.bf16.mxu0 0
    %879 = vmatpush2.bf16.msra.mxu0 0
    %880 = vmatprep.subr.bf16.mxu0 0
    %881 = vmatpush2.bf16.msra.mxu0 0
    %882 = vmatprep.subr.bf16.mxu0 0
    %883 = vmatpush2.bf16.msra.mxu0 0
    %884 = vmatprep.subr.bf16.mxu0 0
    %885 = vmatpush2.bf16.msra.mxu0 0
    %886 = vmatprep.mubr.bf16.mxu0 0
    %887 = vmatmul.mubr.bf16.gmra.mxu0 %v797
    %v888 = vpop.f32.mrf.mxu0
    %v889 = vadd.f32 %v784, %v888
    %v890 = vpop.f32.mrf.mxu0
    %v891 = vadd.f32 %v784, %v890
    %v892 = vpop.f32.mrf.mxu0
    %v893 = vadd.f32 %v789, %v892
    %v894 = vpop.f32.mrf.mxu0
    %v895 = vadd.f32 %v789, %v894
    %896 = vdwg.mxu0
    %v897 = vmax.f32 %v846, 0.0
    %v898 = vmax.f32 %v848, 0.0
    %v899 = vmax.f32 %v889, 0.0
    %v900 = vmax.f32 %v891, 0.0
    %v901 = vmax.f32 %v850, 0.0
    %v902 = vmax.f32 %v852, 0.0
    %v903 = vmax.f32 %v893, 0.0
    %v904 = vmax.f32 %v895, 0.0
    %905 = vst [vmem:[#allocation3] sm:$0xff] %v897
    %906 = vst [vmem:[#allocation3 + $0x8] sm:$0xff] %v898
    %907 = vst [vmem:[#allocation3 + $0x10] sm:$0xff] %v899
    %908 = vst [vmem:[#allocation3 + $0x18] sm:$0xff] %v900
    %909 = vst [vmem:[#allocation3 + $0x28] sm:$0xff] %v901
    %910 = vst [vmem:[#allocation3 + $0x30] sm:$0xff] %v902
    %911 = vst [vmem:[#allocation3 + $0x38] sm:$0xff] %v903
    %912 = vst [vmem:[#allocation3 + $0x40] sm:$0xff] %v904
    %v913 = vshra.s32 %v369, 6
    %v914 = vshra.s32 %v370, 6
    %v915 = vshra.s32 %v371, 6
    %v916 = vshra.s32 %v372, 6
    %v917 = vand.u32 %v365, 63
    %v918 = vand.u32 %v366, 63
    %v919 = vand.u32 %v367, 63
    %v920 = vand.u32 %v368, 63
    %v921 = vshra.s32 %v917, 2
    %v922 = vshra.s32 %v918, 2
    %v923 = vshra.s32 %v919, 2
    %v924 = vshra.s32 %v920, 2
    %v925 = vmul.u32 %v913, 2
    %v926 = vmul.u32 %v914, 2
    %v927 = vmul.u32 %v915, 2
    %v928 = vmul.u32 %v916, 2
    %v929 = vmul.u32 %v925, 5
    %v930 = vmul.u32 %v926, 5
    %v931 = vmul.u32 %v927, 5
    %v932 = vmul.u32 %v928, 5
    %v933 = vmul.u32 %v921, 2
    %v934 = vmul.u32 %v922, 2
    %v935 = vmul.u32 %v923, 2
    %v936 = vmul.u32 %v924, 2
    %v937 = vadd.s32 %v929, %v933
    %v938 = vadd.s32 %v930, %v934
    %v939 = vadd.s32 %v931, %v935
    %v940 = vadd.s32 %v932, %v936
    %v941 = vld [vmem:[#allocation3] sm:$0xff]
    %v942 = vld [vmem:[#allocation3 + $0x8] sm:$0xff]
    %v943 = vld [vmem:[#allocation3 + $0x10] sm:$0xff]
    %v944 = vld [vmem:[#allocation3 + $0x18] sm:$0xff]
    %v945 = vld [vmem:[#allocation3 + $0x28] sm:$0xff]
    %v946 = vld [vmem:[#allocation3 + $0x30] sm:$0xff]
    %v947 = vld [vmem:[#allocation3 + $0x38] sm:$0xff]
    %v948 = vld [vmem:[#allocation3 + $0x40] sm:$0xff]
    %v949 = vld [vmem:[#allocation3] sm:$0xff]
    %v950 = vld [vmem:[#allocation3 + $0x8] sm:$0xff]
    %v951 = vld [vmem:[#allocation3 + $0x10] sm:$0xff]
    %v952 = vld [vmem:[#allocation3 + $0x18] sm:$0xff]
    %v953 = vld [vmem:[#allocation3 + $0x20] sm:$0xff]
    %v954 = vld [vmem:[#allocation3 + $0x28] sm:$0xff]
    %v955 = vld [vmem:[#allocation3 + $0x30] sm:$0xff]
    %v956 = vld [vmem:[#allocation3 + $0x38] sm:$0xff]
    %v957 = vld [vmem:[#allocation3 + $0x40] sm:$0xff]
    %v958 = vld [vmem:[#allocation3 + $0x48] sm:$0xff]
    %967 = vrot.lane.b32.xlu0 %v941, 2
    %v968 = vpop.permute.xlu0 %967
    %969 = vrot.lane.b32.xlu0 %v942, 2
    %v970 = vpop.permute.xlu0 %969
    %971 = vrot.lane.b32.xlu0 %v943, 2
    %v972 = vpop.permute.xlu0 %971
    %973 = vrot.lane.b32.xlu0 %v944, 2
    %v974 = vpop.permute.xlu0 %973
    %975 = vrot.lane.b32.xlu0 %v945, 2
    %v976 = vpop.permute.xlu0 %975
    %977 = vrot.lane.b32.xlu0 %v946, 2
    %v978 = vpop.permute.xlu0 %977
    %979 = vrot.lane.b32.xlu0 %v947, 2
    %v980 = vpop.permute.xlu0 %979
    %981 = vrot.lane.b32.xlu0 %v948, 2
    %v982 = vpop.permute.xlu0 %981
    %vm983 = vcmask 15360
    %v984 = vsel %vm983, %v968, %v970
    %v985 = vsel %vm983, %v970, %v972
    %v986 = vsel %vm983, %v972, %v974
    %v987 = vsel %vm983, %v976, %v978
    %v988 = vsel %vm983, %v978, %v980
    %v989 = vsel %vm983, %v980, %v982
    %vm1000 = vcmp.gt.f32.partialorder %v949, %v968
    %vm1001 = vcmp.gt.f32.partialorder %v950, %v984
    %vm1002 = vcmp.gt.f32.partialorder %v951, %v985
    %vm1003 = vcmp.gt.f32.partialorder %v952, %v986
    %vm1004 = vcmp.gt.f32.partialorder %v953, %v974
    %vm1005 = vcmp.gt.f32.partialorder %v954, %v976
    %vm1006 = vcmp.gt.f32.partialorder %v955, %v987
    %vm1007 = vcmp.gt.f32.partialorder %v956, %v988
    %vm1008 = vcmp.gt.f32.partialorder %v957, %v989
    %vm1009 = vcmp.gt.f32.partialorder %v958, %v982
    %v1010 = vsel %vm1000, %v949, %v968
    %v1011 = vsel %vm1001, %v950, %v984
    %v1012 = vsel %vm1002, %v951, %v985
    %v1013 = vsel %vm1003, %v952, %v986
    %v1014 = vsel %vm1004, %v953, %v974
    %v1015 = vsel %vm1005, %v954, %v976
    %v1016 = vsel %vm1006, %v955, %v987
    %v1017 = vsel %vm1007, %v956, %v988
    %v1018 = vsel %vm1008, %v957, %v989
    %v1019 = vsel %vm1009, %v958, %v982
    %v1020 = vsel %vm1000, 1, 0
    %v1021 = vsel %vm1001, 1, 0
    %v1022 = vsel %vm1002, 1, 0
    %v1023 = vsel %vm1003, 1, 0
    %v1024 = vsel %vm1004, 1, 0
    %v1025 = vsel %vm1005, 1, 0
    %v1026 = vsel %vm1006, 1, 0
    %v1027 = vsel %vm1007, 1, 0
    %v1028 = vsel %vm1008, 1, 0
    %v1029 = vsel %vm1009, 1, 0
    %1040 = vrot.lane.b32.xlu0 %v1010, 30
    %v1041 = vpop.permute.xlu0 %1040
    %1042 = vrot.lane.b32.xlu0 %v1011, 30
    %v1043 = vpop.permute.xlu0 %1042
    %1044 = vrot.lane.b32.xlu0 %v1012, 30
    %v1045 = vpop.permute.xlu0 %1044
    %1046 = vrot.lane.b32.xlu0 %v1013, 30
    %v1047 = vpop.permute.xlu0 %1046
    %1048 = vrot.lane.b32.xlu0 %v1014, 30
    %v1049 = vpop.permute.xlu0 %1048
    %1050 = vrot.lane.b32.xlu0 %v1015, 30
    %v1051 = vpop.permute.xlu0 %1050
    %1052 = vrot.lane.b32.xlu0 %v1016, 30
    %v1053 = vpop.permute.xlu0 %1052
    %1054 = vrot.lane.b32.xlu0 %v1017, 30
    %v1055 = vpop.permute.xlu0 %1054
    %1056 = vrot.lane.b32.xlu0 %v1018, 30
    %v1057 = vpop.permute.xlu0 %1056
    %1058 = vrot.lane.b32.xlu0 %v1019, 30
    %v1059 = vpop.permute.xlu0 %1058
    %vm1060 = vcmask 244736
    %v1061 = vsel %vm1060, %v1041, %v1043
    %v1062 = vsel %vm1060, %v1043, %v1045
    %v1063 = vsel %vm1060, %v1045, %v1047
    %v1064 = vsel %vm1060, %v1047, %v1049
    %v1065 = vsel %vm1060, %v1051, %v1053
    %v1066 = vsel %vm1060, %v1053, %v1055
    %v1067 = vsel %vm1060, %v1055, %v1057
    %v1068 = vsel %vm1060, %v1057, %v1059
    %vm1079 = vcmp.gt.f32.partialorder %v949, %v1041
    %vm1080 = vcmp.gt.f32.partialorder %v950, %v1061
    %vm1081 = vcmp.gt.f32.partialorder %v951, %v1062
    %vm1082 = vcmp.gt.f32.partialorder %v952, %v1063
    %vm1083 = vcmp.gt.f32.partialorder %v953, %v1064
    %vm1084 = vcmp.gt.f32.partialorder %v954, %v1051
    %vm1085 = vcmp.gt.f32.partialorder %v955, %v1065
    %vm1086 = vcmp.gt.f32.partialorder %v956, %v1066
    %vm1087 = vcmp.gt.f32.partialorder %v957, %v1067
    %vm1088 = vcmp.gt.f32.partialorder %v958, %v1068
    %v1089 = vsel %vm1079, %v949, %v1041
    %v1090 = vsel %vm1080, %v950, %v1061
    %v1091 = vsel %vm1081, %v951, %v1062
    %v1092 = vsel %vm1082, %v952, %v1063
    %v1093 = vsel %vm1083, %v953, %v1064
    %v1094 = vsel %vm1084, %v954, %v1051
    %v1095 = vsel %vm1085, %v955, %v1065
    %v1096 = vsel %vm1086, %v956, %v1066
    %v1097 = vsel %vm1087, %v957, %v1067
    %v1098 = vsel %vm1088, %v958, %v1068
    %1099 = vrot.lane.b32.xlu0 %v1020, 30
    %v1100 = vpop.permute.xlu0 %1099
    %1101 = vrot.lane.b32.xlu0 %v1021, 30
    %v1102 = vpop.permute.xlu0 %1101
    %1103 = vrot.lane.b32.xlu0 %v1022, 30
    %v1104 = vpop.permute.xlu0 %1103
    %1105 = vrot.lane.b32.xlu0 %v1023, 30
    %v1106 = vpop.permute.xlu0 %1105
    %1107 = vrot.lane.b32.xlu0 %v1024, 30
    %v1108 = vpop.permute.xlu0 %1107
    %1109 = vrot.lane.b32.xlu0 %v1025, 30
    %v1110 = vpop.permute.xlu0 %1109
    %1111 = vrot.lane.b32.xlu0 %v1026, 30
    %v1112 = vpop.permute.xlu0 %1111
    %1113 = vrot.lane.b32.xlu0 %v1027, 30
    %v1114 = vpop.permute.xlu0 %1113
    %1115 = vrot.lane.b32.xlu0 %v1028, 30
    %v1116 = vpop.permute.xlu0 %1115
    %1117 = vrot.lane.b32.xlu0 %v1029, 30
    %v1118 = vpop.permute.xlu0 %1117
    %v1119 = vsel %vm1060, %v1100, %v1102
    %v1120 = vsel %vm1060, %v1102, %v1104
    %v1121 = vsel %vm1060, %v1104, %v1106
    %v1122 = vsel %vm1060, %v1106, %v1108
    %v1123 = vsel %vm1060, %v1110, %v1112
    %v1124 = vsel %vm1060, %v1112, %v1114
    %v1125 = vsel %vm1060, %v1114, %v1116
    %v1126 = vsel %vm1060, %v1116, %v1118
    %v1127 = vsel %vm1079, 5, %v1100
    %v1128 = vsel %vm1080, 5, %v1119
    %v1129 = vsel %vm1081, 5, %v1120
    %v1130 = vsel %vm1082, 5, %v1121
    %v1131 = vsel %vm1083, 5, %v1122
    %v1132 = vsel %vm1084, 5, %v1110
    %v1133 = vsel %vm1085, 5, %v1123
    %v1134 = vsel %vm1086, 5, %v1124
    %v1135 = vsel %vm1087, 5, %v1125
    %v1136 = vsel %vm1088, 5, %v1126
    %1147 = vrot.lane.b32.xlu0 %v1089, 2
    %v1148 = vpop.permute.xlu0 %1147
    %1149 = vrot.lane.b32.xlu0 %v1090, 2
    %v1150 = vpop.permute.xlu0 %1149
    %1151 = vrot.lane.b32.xlu0 %v1091, 2
    %v1152 = vpop.permute.xlu0 %1151
    %1153 = vrot.lane.b32.xlu0 %v1092, 2
    %v1154 = vpop.permute.xlu0 %1153
    %1155 = vrot.lane.b32.xlu0 %v1093, 2
    %v1156 = vpop.permute.xlu0 %1155
    %1157 = vrot.lane.b32.xlu0 %v1094, 2
    %v1158 = vpop.permute.xlu0 %1157
    %1159 = vrot.lane.b32.xlu0 %v1095, 2
    %v1160 = vpop.permute.xlu0 %1159
    %1161 = vrot.lane.b32.xlu0 %v1096, 2
    %v1162 = vpop.permute.xlu0 %1161
    %1163 = vrot.lane.b32.xlu0 %v1097, 2
    %v1164 = vpop.permute.xlu0 %1163
    %1165 = vrot.lane.b32.xlu0 %v1098, 2
    %v1166 = vpop.permute.xlu0 %1165
    %v1167 = vsel %vm983, %v1148, %v1150
    %v1168 = vsel %vm983, %v1150, %v1152
    %v1169 = vsel %vm983, %v1152, %v1154
    %v1170 = vsel %vm983, %v1154, %v1156
    %v1171 = vsel %vm983, %v1158, %v1160
    %v1172 = vsel %vm983, %v1160, %v1162
    %v1173 = vsel %vm983, %v1162, %v1164
    %v1174 = vsel %vm983, %v1164, %v1166
    %vm1185 = vcmp.gt.f32.partialorder %v949, %v1148
    %vm1186 = vcmp.gt.f32.partialorder %v950, %v1167
    %vm1187 = vcmp.gt.f32.partialorder %v951, %v1168
    %vm1188 = vcmp.gt.f32.partialorder %v952, %v1169
    %vm1189 = vcmp.gt.f32.partialorder %v953, %v1170
    %vm1190 = vcmp.gt.f32.partialorder %v954, %v1158
    %vm1191 = vcmp.gt.f32.partialorder %v955, %v1171
    %vm1192 = vcmp.gt.f32.partialorder %v956, %v1172
    %vm1193 = vcmp.gt.f32.partialorder %v957, %v1173
    %vm1194 = vcmp.gt.f32.partialorder %v958, %v1174
    %v1195 = vsel %vm1185, %v949, %v1148
    %v1196 = vsel %vm1186, %v950, %v1167
    %v1197 = vsel %vm1187, %v951, %v1168
    %v1198 = vsel %vm1188, %v952, %v1169
    %v1199 = vsel %vm1189, %v953, %v1170
    %v1200 = vsel %vm1190, %v954, %v1158
    %v1201 = vsel %vm1191, %v955, %v1171
    %v1202 = vsel %vm1192, %v956, %v1172
    %v1203 = vsel %vm1193, %v957, %v1173
    %v1204 = vsel %vm1194, %v958, %v1174
    %1205 = vrot.lane.b32.xlu0 %v1127, 2
    %v1206 = vpop.permute.xlu0 %1205
    %1207 = vrot.lane.b32.xlu0 %v1128, 2
    %v1208 = vpop.permute.xlu0 %1207
    %1209 = vrot.lane.b32.xlu0 %v1129, 2
    %v1210 = vpop.permute.xlu0 %1209
    %1211 = vrot.lane.b32.xlu0 %v1130, 2
    %v1212 = vpop.permute.xlu0 %1211
    %1213 = vrot.lane.b32.xlu0 %v1131, 2
    %v1214 = vpop.permute.xlu0 %1213
    %1215 = vrot.lane.b32.xlu0 %v1132, 2
    %v1216 = vpop.permute.xlu0 %1215
    %1217 = vrot.lane.b32.xlu0 %v1133, 2
    %v1218 = vpop.permute.xlu0 %1217
    %1219 = vrot.lane.b32.xlu0 %v1134, 2
    %v1220 = vpop.permute.xlu0 %1219
    %1221 = vrot.lane.b32.xlu0 %v1135, 2
    %v1222 = vpop.permute.xlu0 %1221
    %1223 = vrot.lane.b32.xlu0 %v1136, 2
    %v1224 = vpop.permute.xlu0 %1223
    %v1225 = vsel %vm983, %v1206, %v1208
    %v1226 = vsel %vm983, %v1208, %v1210
    %v1227 = vsel %vm983, %v1210, %v1212
    %v1228 = vsel %vm983, %v1212, %v1214
    %v1229 = vsel %vm983, %v1216, %v1218
    %v1230 = vsel %vm983, %v1218, %v1220
    %v1231 = vsel %vm983, %v1220, %v1222
    %v1232 = vsel %vm983, %v1222, %v1224
    %v1233 = vsel %vm1185, 6, %v1206
    %v1234 = vsel %vm1186, 6, %v1225
    %v1235 = vsel %vm1187, 6, %v1226
    %v1236 = vsel %vm1188, 6, %v1227
    %v1237 = vsel %vm1189, 6, %v1228
    %v1238 = vsel %vm1190, 6, %v1216
    %v1239 = vsel %vm1191, 6, %v1229
    %v1240 = vsel %vm1192, 6, %v1230
    %v1241 = vsel %vm1193, 6, %v1231
    %v1242 = vsel %vm1194, 6, %v1232
    %1243 = vrot.lane.b32.xlu0 %v1233, 94
    %v1244 = vpop.permute.xlu0 %1243
    %1245 = vrot.lane.b32.xlu0 %v1234, 94
    %v1246 = vpop.permute.xlu0 %1245
    %1247 = vrot.lane.b32.xlu0 %v1235, 94
    %v1248 = vpop.permute.xlu0 %1247
    %1249 = vrot.lane.b32.xlu0 %v1236, 94
    %v1250 = vpop.permute.xlu0 %1249
    %1251 = vrot.lane.b32.xlu0 %v1237, 94
    %v1252 = vpop.permute.xlu0 %1251
    %1253 = vrot.lane.b32.xlu0 %v1238, 94
    %v1254 = vpop.permute.xlu0 %1253
    %1255 = vrot.lane.b32.xlu0 %v1239, 94
    %v1256 = vpop.permute.xlu0 %1255
    %1257 = vrot.lane.b32.xlu0 %v1240, 94
    %v1258 = vpop.permute.xlu0 %1257
    %1259 = vrot.lane.b32.xlu0 %v1241, 94
    %v1260 = vpop.permute.xlu0 %1259
    %1261 = vrot.lane.b32.xlu0 %v1242, 94
    %v1262 = vpop.permute.xlu0 %1261
    %v1263 = vsel %vm221, %v1244, %v1246
    %v1264 = vsel %vm221, %v1246, %v1248
    %v1265 = vsel %vm221, %v1248, %v1250
    %v1266 = vsel %vm221, %v1250, %v1252
    %v1267 = vsel %vm221, %v1254, %v1256
    %v1268 = vsel %vm221, %v1256, %v1258
    %v1269 = vsel %vm221, %v1258, %v1260
    %v1270 = vsel %vm221, %v1260, %v1262
    %v1271 = vadd.s32 %v937, %v1263
    %v1272 = vadd.s32 %v938, %v1264
    %v1273 = vadd.s32 %v939, %v1265
    %v1274 = vadd.s32 %v940, %v1266
    %v1275 = vadd.s32 %v937, %v1267
    %v1276 = vadd.s32 %v938, %v1268
    %v1277 = vadd.s32 %v939, %v1269
    %v1278 = vadd.s32 %v940, %v1270
    %1279 = vst [vmem:[#allocation9] sm:$0xff] %v1271
    %1280 = vst [vmem:[#allocation9 + $0x8] sm:$0xff] %v1272
    %1281 = vst [vmem:[#allocation9 + $0x10] sm:$0xff] %v1273
    %1282 = vst [vmem:[#allocation9 + $0x18] sm:$0xff] %v1274
    %1283 = vst [vmem:[#allocation9 + $0x20] sm:$0xff] %v1275
    %1284 = vst [vmem:[#allocation9 + $0x28] sm:$0xff] %v1276
    %1285 = vst [vmem:[#allocation9 + $0x30] sm:$0xff] %v1277
    %1286 = vst [vmem:[#allocation9 + $0x38] sm:$0xff] %v1278
    %1297 = vrot.lane.b32.xlu0 %v1195, 94
    %v1298 = vpop.permute.xlu0 %1297
    %1299 = vrot.lane.b32.xlu0 %v1196, 94
    %v1300 = vpop.permute.xlu0 %1299
    %1301 = vrot.lane.b32.xlu0 %v1197, 94
    %v1302 = vpop.permute.xlu0 %1301
    %1303 = vrot.lane.b32.xlu0 %v1198, 94
    %v1304 = vpop.permute.xlu0 %1303
    %1305 = vrot.lane.b32.xlu0 %v1199, 94
    %v1306 = vpop.permute.xlu0 %1305
    %1307 = vrot.lane.b32.xlu0 %v1200, 94
    %v1308 = vpop.permute.xlu0 %1307
    %1309 = vrot.lane.b32.xlu0 %v1201, 94
    %v1310 = vpop.permute.xlu0 %1309
    %1311 = vrot.lane.b32.xlu0 %v1202, 94
    %v1312 = vpop.permute.xlu0 %1311
    %1313 = vrot.lane.b32.xlu0 %v1203, 94
    %v1314 = vpop.permute.xlu0 %1313
    %1315 = vrot.lane.b32.xlu0 %v1204, 94
    %v1316 = vpop.permute.xlu0 %1315
    %v1317 = vsel %vm221, %v1298, %v1300
    %v1318 = vsel %vm221, %v1300, %v1302
    %v1319 = vsel %vm221, %v1302, %v1304
    %v1320 = vsel %vm221, %v1304, %v1306
    %v1321 = vsel %vm221, %v1308, %v1310
    %v1322 = vsel %vm221, %v1310, %v1312
    %v1323 = vsel %vm221, %v1312, %v1314
    %v1324 = vsel %vm221, %v1314, %v1316
    %1333 = vst [vmem:[#allocation2] sm:$0xff] %v1317
    %1334 = vst [vmem:[#allocation2 + $0x8] sm:$0xff] %v1318
    %1335 = vst [vmem:[#allocation2 + $0x10] sm:$0xff] %v1319
    %1336 = vst [vmem:[#allocation2 + $0x18] sm:$0xff] %v1320
    %1337 = vst [vmem:[#allocation2 + $0x28] sm:$0xff] %v1321
    %1338 = vst [vmem:[#allocation2 + $0x30] sm:$0xff] %v1322
    %1339 = vst [vmem:[#allocation2 + $0x38] sm:$0xff] %v1323
    %1340 = vst [vmem:[#allocation2 + $0x40] sm:$0xff] %v1324
    %v1341 = vld [vmem:[#allocation2] sm:$0xff]
    %v1342 = vld [vmem:[#allocation2 + $0x28] sm:$0xff]
    %1343 = vst.msk [vmem:[#allocation4] sm:$0xff] %vm418, %v1341
    %1344 = vst.msk [vmem:[#allocation4 + $0x8] sm:$0xff] %vm418, %v1342
    %v1345 = vld [vmem:[#allocation2 + $0x10] sm:$0xff]
    %v1346 = vld [vmem:[#allocation2 + $0x38] sm:$0xff]
    %1349 = vrot.lane.b32.xlu0 %v1345, 1
    %v1350 = vpop.permute.xlu0 %1349
    %1351 = vrot.lane.b32.xlu0 %v1346, 1
    %v1352 = vpop.permute.xlu0 %1351
    %vm1355 = vcmask 15368
    %1356 = vst.msk [vmem:[#allocation4] sm:$0xff] %vm1355, %v1350
    %1357 = vst.msk [vmem:[#allocation4 + $0x8] sm:$0xff] %vm1355, %v1352
    %v1358 = vld [vmem:[#allocation2] sm:$0xff]
    %v1359 = vld [vmem:[#allocation2 + $0x28] sm:$0xff]
    %1362 = vrot.lane.b32.xlu0 %v1358, 124
    %v1363 = vpop.permute.xlu0 %1362
    %1364 = vrot.lane.b32.xlu0 %v1359, 124
    %v1365 = vpop.permute.xlu0 %1364
    %1368 = vst.msk [vmem:[#allocation4 + $0x10] sm:$0xff] %vm418, %v1363
    %1369 = vst.msk [vmem:[#allocation4 + $0x18] sm:$0xff] %vm418, %v1365
    %v1370 = vld [vmem:[#allocation2 + $0x10] sm:$0xff]
    %v1371 = vld [vmem:[#allocation2 + $0x38] sm:$0xff]
    %1374 = vrot.lane.b32.xlu0 %v1370, 125
    %v1375 = vpop.permute.xlu0 %1374
    %1376 = vrot.lane.b32.xlu0 %v1371, 125
    %v1377 = vpop.permute.xlu0 %1376
    %1380 = vst.msk [vmem:[#allocation4 + $0x10] sm:$0xff] %vm1355, %v1375
    %1381 = vst.msk [vmem:[#allocation4 + $0x18] sm:$0xff] %vm1355, %v1377
    %v1382 = vld [vmem:[#allocation2] sm:$0xff]
    %v1383 = vld [vmem:[#allocation2 + $0x28] sm:$0xff]
    %1386 = vrot.lane.b32.xlu0 %v1382, 64
    %v1387 = vpop.permute.xlu0 %1386
    %1388 = vrot.lane.b32.xlu0 %v1383, 64
    %v1389 = vpop.permute.xlu0 %1388
    %1392 = vst.msk [vmem:[#allocation4 + $0x20] sm:$0xff] %vm418, %v1387
    %1393 = vst.msk [vmem:[#allocation4 + $0x28] sm:$0xff] %vm418, %v1389
    %v1394 = vld [vmem:[#allocation2 + $0x10] sm:$0xff]
    %v1395 = vld [vmem:[#allocation2 + $0x38] sm:$0xff]
    %1398 = vrot.lane.b32.xlu0 %v1394, 65
    %v1399 = vpop.permute.xlu0 %1398
    %1400 = vrot.lane.b32.xlu0 %v1395, 65
    %v1401 = vpop.permute.xlu0 %1400
    %1404 = vst.msk [vmem:[#allocation4 + $0x20] sm:$0xff] %vm1355, %v1399
    %1405 = vst.msk [vmem:[#allocation4 + $0x28] sm:$0xff] %vm1355, %v1401
    %v1406 = vld [vmem:[#allocation2] sm:$0xff]
    %v1407 = vld [vmem:[#allocation2 + $0x28] sm:$0xff]
    %1410 = vrot.lane.b32.xlu0 %v1406, 60
    %v1411 = vpop.permute.xlu0 %1410
    %1412 = vrot.lane.b32.xlu0 %v1407, 60
    %v1413 = vpop.permute.xlu0 %1412
    %1416 = vst.msk [vmem:[#allocation4 + $0x30] sm:$0xff] %vm418, %v1411
    %1417 = vst.msk [vmem:[#allocation4 + $0x38] sm:$0xff] %vm418, %v1413
    %v1418 = vld [vmem:[#allocation2 + $0x10] sm:$0xff]
    %v1419 = vld [vmem:[#allocation2 + $0x38] sm:$0xff]
    %1422 = vrot.lane.b32.xlu0 %v1418, 61
    %v1423 = vpop.permute.xlu0 %1422
    %1424 = vrot.lane.b32.xlu0 %v1419, 61
    %v1425 = vpop.permute.xlu0 %1424
    %1428 = vst.msk [vmem:[#allocation4 + $0x30] sm:$0xff] %vm1355, %v1423
    %1429 = vst.msk [vmem:[#allocation4 + $0x38] sm:$0xff] %vm1355, %v1425
    %v1430 = vld [vmem:[#allocation4] sm:$0xff]
    %v1431 = vld [vmem:[#allocation4 + $0x8] sm:$0xff]
    %v1432 = vld [vmem:[#allocation4 + $0x10] sm:$0xff]
    %v1433 = vld [vmem:[#allocation4 + $0x18] sm:$0xff]
    %v1434 = vld [vmem:[#allocation4 + $0x20] sm:$0xff]
    %v1435 = vld [vmem:[#allocation4 + $0x28] sm:$0xff]
    %v1436 = vld [vmem:[#allocation4 + $0x30] sm:$0xff]
    %v1437 = vld [vmem:[#allocation4 + $0x38] sm:$0xff]
    %v1438 = vpack.c.bf16 %v1431, %v1430
    %v1439 = vpack.c.bf16 %v1433, %v1432
    %v1440 = vpack.c.bf16 %v1435, %v1434
    %v1441 = vpack.c.bf16 %v1437, %v1436
    %v1442 = vld [vmem:[%s5] sm:$0xf]
    %v1443 = vld [vmem:[%s5 + $0x4] sm:$0xf]
    %v1444 = vld [vmem:[%s5 + $0x8] sm:$0xf]
    %v1445 = vld [vmem:[%s5 + $0xc] sm:$0xf]
    %v1446 = vld [vmem:[%s6] sm:$0xff]
    %v1447 = vld [vmem:[%s6 + $0x8] sm:$0xff]
    %v1448 = vld [vmem:[%s6 + $0x10] sm:$0xff]
    %v1449 = vld [vmem:[%s6 + $0x18] sm:$0xff]
    %1451 = vset.pattern.permute.xlu0 0
    %1452 = vperm.xlu0 %1451, %v1446
    %v1453 = vpop.permute.xlu0 %1452
    %1456 = vset.pattern.permute.xlu0 0
    %1457 = vperm.xlu0 %1456, %v1447
    %v1458 = vpop.permute.xlu0 %1457
    %1461 = vset.pattern.permute.xlu0 0
    %1462 = vperm.xlu0 %1461, %v1448
    %v1463 = vpop.permute.xlu0 %1462
    %1466 = vset.pattern.permute.xlu0 0
    %1467 = vperm.xlu0 %1466, %v1449
    %v1468 = vpop.permute.xlu0 %1467
    %v1474 = vunpack.c.l.b16 %v1442
    %v1475 = vunpack.c.l.b16 %v1443
    %v1476 = vunpack.c.l.b16 %v1444
    %v1477 = vunpack.c.l.b16 %v1445
    %v1478 = vpack.c.b16 %v1475, %v1474
    %v1479 = vpack.c.b16 %v1477, %v1476
    %v1481 = vsel %vm710, %v1478, 0
    %v1484 = vsel %vm710, %v1479, 0
    %1486 = vmatprep.subr.bf16.mxu0 0
    %1487 = vmatpush1.bf16.msra.mxu0 0
    %1488 = vmatprep.subr.bf16.mxu0 0
    %1489 = vmatpush1.bf16.msra.mxu0 0
    %1490 = vmatprep.subr.bf16.mxu0 0
    %1491 = vmatpush1.bf16.msra.mxu0 0
    %1492 = vmatprep.subr.bf16.mxu0 0
    %1493 = vmatpush1.bf16.msra.mxu0 0
    %1494 = vmatprep.subr.bf16.mxu0 0
    %1495 = vmatpush1.bf16.msra.mxu0 %v1441
    %1496 = vmatprep.subr.bf16.mxu0 0
    %1497 = vmatpush1.bf16.msra.mxu0 %v1440
    %1498 = vmatprep.subr.bf16.mxu0 0
    %1499 = vmatpush1.bf16.msra.mxu0 %v1439
    %1500 = vmatprep.subr.bf16.mxu0 0
    %1501 = vmatpush1.bf16.msra.mxu0 %v1438
    %1502 = vmatprep.subr.bf16.mxu0 0
    %1503 = vmatpush2.bf16.msra.mxu0 0
    %1504 = vmatprep.subr.bf16.mxu0 0
    %1505 = vmatpush2.bf16.msra.mxu0 0
    %1506 = vmatprep.subr.bf16.mxu0 0
    %1507 = vmatpush2.bf16.msra.mxu0 0
    %1508 = vmatprep.subr.bf16.mxu0 0
    %1509 = vmatpush2.bf16.msra.mxu0 0
    %1510 = vmatprep.subr.bf16.mxu0 0
    %1511 = vmatpush2.bf16.msra.mxu0 0
    %1512 = vmatprep.subr.bf16.mxu0 0
    %1513 = vmatpush2.bf16.msra.mxu0 0
    %1514 = vmatprep.subr.bf16.mxu0 0
    %1515 = vmatpush2.bf16.msra.mxu0 0
    %1516 = vmatprep.subr.bf16.mxu0 0
    %1517 = vmatpush2.bf16.msra.mxu0 0
    %1518 = vmatprep.mubr.bf16.mxu0 0
    %1519 = vmatmul.mubr.bf16.gmra.mxu0 %v1481
    %v1520 = vpop.f32.mrf.mxu0
    %v1521 = vadd.f32 %v1453, %v1520
    %v1522 = vpop.f32.mrf.mxu0
    %v1523 = vpop.f32.mrf.mxu0
    %v1524 = vadd.f32 %v1458, %v1523
    %v1525 = vpop.f32.mrf.mxu0
    %1526 = vmatprep.mubr.bf16.mxu0 0
    %1527 = vmatmul.mubr.bf16.gmra.mxu0 %v1484
    %v1528 = vpop.f32.mrf.mxu0
    %v1529 = vadd.f32 %v1463, %v1528
    %v1530 = vpop.f32.mrf.mxu0
    %v1531 = vpop.f32.mrf.mxu0
    %v1532 = vadd.f32 %v1468, %v1531
    %v1533 = vpop.f32.mrf.mxu0
    %1534 = vdwg.mxu0
    %v1535 = vmax.f32 %v1521, 0.0
    %v1536 = vmax.f32 %v1524, 0.0
    %v1537 = vmax.f32 %v1529, 0.0
    %v1538 = vmax.f32 %v1532, 0.0
    %1539 = vst.msk [vmem:[%s7] sm:$0xff] %vm983, %v1535
    %1540 = vst.msk [vmem:[%s7 + $0x8] sm:$0xff] %vm983, %v1536
    %1541 = vst.msk [vmem:[%s7 + $0x10] sm:$0xff] %vm983, %v1537
    %1542 = vst.msk [vmem:[%s7 + $0x18] sm:$0xff] %vm983, %v1538
    // Predicated region
    $region34: #{tpu_custom_call.1} parent=1 // pred_check
      _
    $region35: #{tpu_custom_call.1} parent=1 // pred_check_branch
      %1544 = sbr.rel (0) target = $region37
    $region36: #{tpu_custom_call.1} parent=1 // pred_region
      _
    $region37: #{tpu_custom_call.1} parent=1 // pred_fallthru
      _
    // Predicated region
    $region38: #{tpu_custom_call.1} parent=1 // pred_check
      _
    $region39: #{tpu_custom_call.1} parent=1 // pred_check_branch
      %1546 = sbr.rel (0) target = $region41
    $region40: #{tpu_custom_call.1} parent=1 // pred_region
      %s1548 = ssub.s32 512, 512
      %1549 = vsyncadd [#allocation7], %s1548
      %s1551 = sshll.u32 [#allocation8], 4
      %s1552 = int_to_ptr.vmem [resolvable:$true] %s1551
      %1554 = dma.vmem_to_hbm [thread:$0]  %s1552, 512, %s8, [#allocation7]
    $region41: #{tpu_custom_call.1} parent=1 // pred_fallthru
      _
    // Predicated region
    $region42: #{tpu_custom_call.1} parent=1 // pred_check
      _
    $region43: #{tpu_custom_call.1} parent=1 // pred_check_branch
      %1556 = sbr.rel (0) target = $region45
    $region44: #{tpu_custom_call.1} parent=1 // pred_region
      %s1558 = ssub.s32 1024, 1024
      %1559 = vsyncadd [#allocation10], %s1558
      %s1560 = sshll.u32 [#allocation9], 4
      %s1561 = int_to_ptr.vmem [resolvable:$true] %s1560
      %1566 = dma.vmem_to_hbm [thread:$0]  %s1561, 1024, %s9, [#allocation10], 512, 512, 32
    $region45: #{tpu_custom_call.1} parent=1 // pred_fallthru
      _
    // Predicated region
    $region46: #{tpu_custom_call.1} parent=1 // pred_check
      _
    $region47: #{tpu_custom_call.1} parent=1 // pred_check_branch
      %1568 = sbr.rel (0) target = $region49
    $region48: #{tpu_custom_call.1} parent=1 // pred_region
      _
    $region49: #{tpu_custom_call.1} parent=1 // pred_fallthru
      _
    // Predicated region
    $region50: #{tpu_custom_call.1} parent=1 // pred_check
      _
    $region51: #{tpu_custom_call.1} parent=1 // pred_check_branch
      %1570 = sbr.rel (0) target = $region53
    $region52: #{tpu_custom_call.1} parent=1 // pred_region
      %1571 = dma.done [#allocation7], 512
    $region53: #{tpu_custom_call.1} parent=1 // pred_fallthru
      _
    // Predicated region
    $region54: #{tpu_custom_call.1} parent=1 // pred_check
      _
    $region55: #{tpu_custom_call.1} parent=1 // pred_check_branch
      %1573 = sbr.rel (0) target = $region57
    $region56: #{tpu_custom_call.1} parent=1 // pred_region
      %1574 = dma.done [#allocation10], 1024
    $region57: #{tpu_custom_call.1} parent=1 // pred_fallthru
      _
    %1575 = vsyncpa [#allocation6], 1
    %1576 = vsyncpa [#allocation7], 1
    %1577 = vsyncpa [#allocation10], 1

</llo_original>
